<compile_context>
chip_gen: v5e
topology: v5e:2x2
jax: 0.10.0
libtpu: 0.0.40
codegen_flags: <defaults>
</compile_context>

<pallas_src>
import functools

import jax
import jax.numpy as jnp
from jax.experimental import pallas as pl
from jax.experimental.pallas import tpu as pltpu


# ----------------------------------------------------------------------------
# Fused whole-network kernel
# ----------------------------------------------------------------------------
def inception_time_kernel(x_ref, w_in_ref, b_in_ref, wbot_ref, wtaps_ref,
                          wpool_ref, gamma_ref, beta_ref, w_out_ref, b_out_ref,
                          o_ref, *, num_layers, K, P, KP):
    N, T, Din = x_ref.shape
    Cp = w_in_ref.shape[1]
    NT = N * T
    f32 = jnp.float32
    bf16 = jnp.bfloat16

    # ---- inlinear: (N*T, Din) @ (Din, Cp) + b  (bf16 MXU, f32 accumulate) --
    x2 = x_ref[...].reshape(NT, Din).astype(bf16)
    h = jnp.dot(x2, w_in_ref[...], preferred_element_type=f32) + b_in_ref[...]

    # Per-sample time index in the flattened (N*T, ...) layout.  Built once;
    # used for the maxpool edge masks and the im2col validity masks.  The
    # sublane rolls below wrap across sample boundaries — these masks are what
    # keeps that wrap from leaking between samples, so keep them coupled to
    # the rolls if the layout ever changes.
    tflat = jax.lax.broadcasted_iota(jnp.int32, (N, T, 1), 1).reshape(NT, 1)
    zpad = jnp.zeros((NT, KP - K), f32)     # pad lanes K..KP-1 of the im2col

    for l in range(num_layers):             # small static unroll (<= 4)
        h_bf = h.astype(bf16)

        # -- bottleneck Linear(C -> 1, no bias) on the MXU (frees VPU+XLU) ---
        bot = jnp.dot(h_bf, wbot_ref[l], preferred_element_type=f32)  # (NT,1)

        # -- MaxPool1d(3, stride=1, pad=1) over time: sublane rolls + edge
        #    masks, computed incrementally so only one temporary stays live --
        pooled = jnp.maximum(
            h, jnp.where(tflat == 0, -jnp.inf, pltpu.roll(h, 1, 0)))
        pooled = jnp.maximum(
            pooled, jnp.where(tflat == T - 1, -jnp.inf,
                              pltpu.roll(h, NT - 1, 0)))

        # -- im2col of the bottleneck signal, entirely in registers:
        #    column j = bot shifted by (j - P) timesteps (sublane roll with a
        #    non-negative modular shift + validity mask); all K columns are
        #    concatenated once along the lane axis and fed straight into the
        #    MXU.  No VMEM scratch, no masked single-lane stores.
        #    TODO(synk): a single strided pltpu.roll over a lane-broadcast of
        #    `bot` could fuse the K narrow rolls into one wide XLU op.
        cols = []
        for j in range(K):
            s = j - P                        # tap offset in time, -P .. +P
            if s == 0:
                cols.append(bot)
                continue
            rolled = pltpu.roll(bot, (-s) % NT, 0)
            if s < 0:                        # rows t < -s would read t < 0
                cols.append(jnp.where(tflat < -s, 0.0, rolled))
            else:                            # rows t >= T-s would read t >= T
                cols.append(jnp.where(tflat >= T - s, 0.0, rolled))
        cols.append(zpad)
        a_mat = jnp.concatenate(cols, axis=1).astype(bf16)     # (NT, KP)

        # -- conv33 + conv17 + conv9 (one K=KP dot) + maxpool 1x1 conv
        #    (one K=Cp dot); `pooled` never round-trips through VMEM ---------
        feats = (jnp.dot(a_mat, wtaps_ref[l], preferred_element_type=f32)
                 + jnp.dot(pooled.astype(bf16), wpool_ref[l],
                           preferred_element_type=f32))        # (NT, Cp) f32

        # -- BatchNorm1d (train-mode batch stats over N*T, biased variance,
        #    eps=1e-5) with a centered second pass, then ReLU ----------------
        mean = jnp.sum(feats, axis=0, keepdims=True) * (1.0 / NT)
        d = feats - mean
        var = jnp.sum(d * d, axis=0, keepdims=True) * (1.0 / NT)
        y = d * jax.lax.rsqrt(var + 1e-5) * gamma_ref[l] + beta_ref[l]
        y = jnp.maximum(y, 0.0)

        # -- residual add + ReLU ----------------------------------------------
        h = jnp.maximum(y + h, 0.0)

    # ---- head: AdaptiveAvgPool1d(1) + outlinear + log_softmax (all f32) ----
    pooled_t = jnp.mean(h.reshape(N, T, Cp), axis=1)           # (N, Cp)
    logits = jnp.dot(pooled_t, w_out_ref[...],
                     preferred_element_type=f32) + b_out_ref[...]
    m = jnp.max(logits, axis=-1, keepdims=True)
    lse = jnp.log(jnp.sum(jnp.exp(logits - m), axis=-1, keepdims=True)) + m
    o_ref[...] = logits - lse


# ----------------------------------------------------------------------------
# VMEM limit: derive per TPU generation instead of hardcoding 64 MiB
# (64 MiB is the entire physical VMEM per TensorCore on v7x).
# ----------------------------------------------------------------------------
def _vmem_limit_bytes():
    try:
        phys = int(pltpu.get_tpu_info().vmem_capacity_bytes)
        return max(32 * 1024 * 1024, int(phys * 0.8))   # ~51 MiB v7x, ~102 MiB v5e/v6e
    except Exception:
        return 48 * 1024 * 1024                         # safe on every generation


# ----------------------------------------------------------------------------
# Wrapper
# ----------------------------------------------------------------------------
def inception_time_forward(params, x):
    """x: (N, T, input_dim) float32 -> log-probabilities (N, num_classes)."""
    N, T, _ = x.shape
    meta = params["meta"]

    kern = functools.partial(inception_time_kernel,
                             num_layers=meta["num_layers"], K=meta["K"],
                             P=meta["P"], KP=meta["KP"])
    vmem = pl.BlockSpec(memory_space=pltpu.MemorySpace.VMEM)

    return pl.pallas_call(
        kern,
        out_shape=jax.ShapeDtypeStruct((N, meta["num_classes"]), jnp.float32),
        in_specs=[vmem] * 10,
        out_specs=vmem,
        compiler_params=pltpu.CompilerParams(
            vmem_limit_bytes=_vmem_limit_bytes()),
    )(x, params["w_in"], params["b_in"], params["wbot"], params["wtaps"],
      params["wpool"], params["gamma"], params["beta"], params["w_out"],
      params["b_out"])


# ----------------------------------------------------------------------------
# Deterministic parameter construction (shapes from the nn.Module __init__),
# packed into the padded / stacked / fused layout the kernel expects.
# Channel layout: [conv33 | conv17 | conv9 | pool] = C, zero-padded to Cp.
# MXU-side weights are stored in bf16 (halves weight DMA + VMEM); BN affine,
# biases and the output head stay f32.
# ----------------------------------------------------------------------------
def init_params(key, input_dim, num_classes, num_layers, hidden_dims):
    C = hidden_dims * 4
    Cq = C // 4
    Cp = max(128, ((C + 127) // 128) * 128)
    K, P, KP = 33, 16, 128
    f32, bf16 = jnp.float32, jnp.bfloat16

    keys = jax.random.split(key, 4 + num_layers)

    w_in = jnp.zeros((input_dim, Cp), f32).at[:, :C].set(
        0.1 * jax.random.normal(keys[0], (input_dim, C), f32)).astype(bf16)
    b_in = jnp.zeros((1, Cp), f32).at[:, :C].set(
        0.1 * jax.random.normal(keys[1], (1, C), f32))
    w_out = jnp.zeros((Cp, num_classes), f32).at[:C, :].set(
        0.1 * jax.random.normal(keys[2], (C, num_classes), f32))
    b_out = 0.1 * jax.random.normal(keys[3], (1, num_classes), f32)

    wbot_l, wtaps_l, wpool_l, gamma_l, beta_l = [], [], [], [], []
    for l in range(num_layers):
        k = jax.random.split(keys[4 + l], 7)
        wbot = jnp.zeros((Cp, 1), f32).at[:C, 0].set(
            0.1 * jax.random.normal(k[0], (C,), f32))
        # Conv1d weights (Cq, 1, ks) stored as (ks, Cq); the 17/9-tap kernels
        # are zero-embedded centered inside the 33 tap rows; the pool branch's
        # 1x1 conv weight (C, Cq) is a separate (Cp, Cp) operand.
        w33 = 0.1 * jax.random.normal(k[1], (33, Cq), f32)
        w17 = 0.1 * jax.random.normal(k[2], (17, Cq), f32)
        w9 = 0.1 * jax.random.normal(k[3], (9, Cq), f32)
        wpool_c = 0.1 * jax.random.normal(k[4], (C, Cq), f32)
        wtaps = jnp.zeros((KP, Cp), f32)
        wtaps = wtaps.at[0:33, 0:Cq].set(w33)
        wtaps = wtaps.at[8:25, Cq:2 * Cq].set(w17)
        wtaps = wtaps.at[12:21, 2 * Cq:3 * Cq].set(w9)
        wpool = jnp.zeros((Cp, Cp), f32).at[:C, 3 * Cq:4 * Cq].set(wpool_c)
        gamma = jnp.zeros((1, Cp), f32).at[0, :C].set(
            1.0 + 0.1 * jax.random.normal(k[5], (C,), f32))
        beta = jnp.zeros((1, Cp), f32).at[0, :C].set(
            0.1 * jax.random.normal(k[6], (C,), f32))
        wbot_l.append(wbot.astype(bf16))
        wtaps_l.append(wtaps.astype(bf16))
        wpool_l.append(wpool.astype(bf16))
        gamma_l.append(gamma)
        beta_l.append(beta)

    return {
        "w_in": w_in, "b_in": b_in, "w_out": w_out, "b_out": b_out,
        "wbot": jnp.stack(wbot_l), "wtaps": jnp.stack(wtaps_l),
        "wpool": jnp.stack(wpool_l), "gamma": jnp.stack(gamma_l),
        "beta": jnp.stack(beta_l),
        "meta": dict(num_layers=num_layers, K=K, P=P, KP=KP, Cp=Cp,
                     num_classes=num_classes),
    }


# ----------------------------------------------------------------------------
# Demo
# ----------------------------------------------------------------------------
if __name__ == "__main__":
    # Small demo shapes consistent with the module: batch=2, seq len T=16,
    # input_dim=4, hidden_dims=8 (=> C=32 channels, padded to Cp=128 lanes).
    # NOTE: at this toy width 3/4 of the lanes are provably-zero work — do not
    # extrapolate performance from this config; production hidden_dims=64
    # gives C=256 (two full lane groups).  num_classes=9, 2 inception layers.
    N, T, input_dim = 2, 16, 4
    hidden_dims, num_classes, num_layers = 8, 9, 2

    key = jax.random.PRNGKey(0)
    pkey, xkey = jax.random.split(key)
    params = init_params(pkey, input_dim, num_classes, num_layers, hidden_dims)
    x = jax.random.normal(xkey, (N, T, input_dim), jnp.float32)

    logprobs = inception_time_forward(params, x)
    logprobs = jax.block_until_ready(logprobs)

    assert logprobs.shape == (N, num_classes), logprobs.shape
    assert bool(jnp.all(jnp.isfinite(logprobs)))
    # log_softmax sanity: rows of exp(logprobs) must sum to 1.
    row_sums = jnp.sum(jnp.exp(logprobs), axis=-1)
    assert bool(jnp.all(jnp.abs(row_sums - 1.0) < 1e-3)), row_sums

    print("KERNEL_OK")
</pallas_src>

<mosaic_0001>
module attributes {stable_mosaic.version = 11 : i64} {
  func.func @inception_time_kernel(%arg0: memref<2x16x4xf32, #tpu.memory_space<vmem>>, %arg1: memref<4x128xbf16, #tpu.memory_space<vmem>>, %arg2: memref<1x128xf32, #tpu.memory_space<vmem>>, %arg3: memref<2x128x1xbf16, #tpu.memory_space<vmem>>, %arg4: memref<2x128x128xbf16, #tpu.memory_space<vmem>>, %arg5: memref<2x128x128xbf16, #tpu.memory_space<vmem>>, %arg6: memref<2x1x128xf32, #tpu.memory_space<vmem>>, %arg7: memref<2x1x128xf32, #tpu.memory_space<vmem>>, %arg8: memref<128x9xf32, #tpu.memory_space<vmem>>, %arg9: memref<1x9xf32, #tpu.memory_space<vmem>>, %arg10: memref<2x9xf32, #tpu.memory_space<vmem>>) attributes {dimension_semantics = [], scalar_prefetch = 0 : i64, scratch_operands = 0 : i64, tpu.core_type = #tpu.core_type<tc>} {
    %c0 = arith.constant 0 : index
    %c0_0 = arith.constant 0 : index
    %c0_1 = arith.constant 0 : index
    %0 = vector.load %arg0[%c0, %c0_0, %c0_1] : memref<2x16x4xf32, #tpu.memory_space<vmem>>, vector<2x16x4xf32>
    %1 = vector.shape_cast %0 : vector<2x16x4xf32> to vector<32x4xf32>
    %2 = arith.truncf %1 : vector<32x4xf32> to vector<32x4xbf16>
    %c0_2 = arith.constant 0 : index
    %c0_3 = arith.constant 0 : index
    %3 = vector.load %arg1[%c0_2, %c0_3] : memref<4x128xbf16, #tpu.memory_space<vmem>>, vector<4x128xbf16>
    %cst = arith.constant dense<0.000000e+00> : vector<32x128xf32>
    %4 = tpu.matmul %2, %3, %cst {dimension_numbers = #tpu.dot_dimension_numbers<[1], [0], [0], [1], [0, 0, 1, 1], [], []>} : vector<32x4xbf16>, vector<4x128xbf16>, vector<32x128xf32> -> vector<32x128xf32>
    %c0_4 = arith.constant 0 : index
    %c0_5 = arith.constant 0 : index
    %5 = vector.load %arg2[%c0_4, %c0_5] : memref<1x128xf32, #tpu.memory_space<vmem>>, vector<1x128xf32>
    %6 = vector.broadcast %5 : vector<1x128xf32> to vector<32x128xf32>
    %7 = arith.addf %4, %6 : vector<32x128xf32>
    %8 = tpu.iota {dimensions = array<i32: 1>} : vector<2x16x1xi32>
    %9 = vector.shape_cast %8 : vector<2x16x1xi32> to vector<32x1xi32>
    %cst_6 = arith.constant 0.000000e+00 : f32
    %10 = vector.broadcast %cst_6 : f32 to vector<32x95xf32>
    %11 = arith.truncf %7 : vector<32x128xf32> to vector<32x128xbf16>
    %c0_7 = arith.constant 0 : index
    %c0_8 = arith.constant 0 : index
    %c0_9 = arith.constant 0 : index
    %12 = vector.load %arg3[%c0_7, %c0_8, %c0_9] : memref<2x128x1xbf16, #tpu.memory_space<vmem>>, vector<1x128x1xbf16>
    %13 = vector.shape_cast %12 : vector<1x128x1xbf16> to vector<128x1xbf16>
    %cst_10 = arith.constant dense<0.000000e+00> : vector<32x1xf32>
    %14 = tpu.matmul %11, %13, %cst_10 {dimension_numbers = #tpu.dot_dimension_numbers<[1], [0], [0], [1], [0, 0, 1, 1], [], []>} : vector<32x128xbf16>, vector<128x1xbf16>, vector<32x1xf32> -> vector<32x1xf32>
    %c0_i32 = arith.constant 0 : i32
    %15 = vector.broadcast %c0_i32 : i32 to vector<32x1xi32>
    %16 = arith.cmpi eq, %9, %15 : vector<32x1xi32>
    %c1_i32 = arith.constant 1 : i32
    %17 = tpu.dynamic_rotate %7 by %c1_i32 dim 0 : vector<32x128xf32>, i32 -> vector<32x128xf32>
    %cst_11 = arith.constant 0xFF800000 : f32
    %18 = vector.shape_cast %16 : vector<32x1xi1> to vector<32x1xi1>
    %19 = vector.broadcast %18 : vector<32x1xi1> to vector<32x128xi1>
    %20 = vector.broadcast %cst_11 : f32 to vector<32x128xf32>
    %21 = arith.select %19, %20, %17 : vector<32x128xi1>, vector<32x128xf32>
    %22 = arith.maximumf %7, %21 : vector<32x128xf32>
    %c15_i32 = arith.constant 15 : i32
    %23 = vector.broadcast %c15_i32 : i32 to vector<32x1xi32>
    %24 = arith.cmpi eq, %9, %23 : vector<32x1xi32>
    %c31_i32 = arith.constant 31 : i32
    %25 = tpu.dynamic_rotate %7 by %c31_i32 dim 0 : vector<32x128xf32>, i32 -> vector<32x128xf32>
    %cst_12 = arith.constant 0xFF800000 : f32
    %26 = vector.shape_cast %24 : vector<32x1xi1> to vector<32x1xi1>
    %27 = vector.broadcast %26 : vector<32x1xi1> to vector<32x128xi1>
    %28 = vector.broadcast %cst_12 : f32 to vector<32x128xf32>
    %29 = arith.select %27, %28, %25 : vector<32x128xi1>, vector<32x128xf32>
    %30 = arith.maximumf %22, %29 : vector<32x128xf32>
    %c16_i32 = arith.constant 16 : i32
    %31 = tpu.dynamic_rotate %14 by %c16_i32 dim 0 : vector<32x1xf32>, i32 -> vector<32x1xf32>
    %c16_i32_13 = arith.constant 16 : i32
    %32 = vector.broadcast %c16_i32_13 : i32 to vector<32x1xi32>
    %33 = arith.cmpi slt, %9, %32 : vector<32x1xi32>
    %cst_14 = arith.constant 0.000000e+00 : f32
    %34 = vector.broadcast %cst_14 : f32 to vector<32x1xf32>
    %35 = arith.select %33, %34, %31 : vector<32x1xi1>, vector<32x1xf32>
    %c15_i32_15 = arith.constant 15 : i32
    %36 = tpu.dynamic_rotate %14 by %c15_i32_15 dim 0 : vector<32x1xf32>, i32 -> vector<32x1xf32>
    %c15_i32_16 = arith.constant 15 : i32
    %37 = vector.broadcast %c15_i32_16 : i32 to vector<32x1xi32>
    %38 = arith.cmpi slt, %9, %37 : vector<32x1xi32>
    %cst_17 = arith.constant 0.000000e+00 : f32
    %39 = vector.broadcast %cst_17 : f32 to vector<32x1xf32>
    %40 = arith.select %38, %39, %36 : vector<32x1xi1>, vector<32x1xf32>
    %c14_i32 = arith.constant 14 : i32
    %41 = tpu.dynamic_rotate %14 by %c14_i32 dim 0 : vector<32x1xf32>, i32 -> vector<32x1xf32>
    %c14_i32_18 = arith.constant 14 : i32
    %42 = vector.broadcast %c14_i32_18 : i32 to vector<32x1xi32>
    %43 = arith.cmpi slt, %9, %42 : vector<32x1xi32>
    %cst_19 = arith.constant 0.000000e+00 : f32
    %44 = vector.broadcast %cst_19 : f32 to vector<32x1xf32>
    %45 = arith.select %43, %44, %41 : vector<32x1xi1>, vector<32x1xf32>
    %c13_i32 = arith.constant 13 : i32
    %46 = tpu.dynamic_rotate %14 by %c13_i32 dim 0 : vector<32x1xf32>, i32 -> vector<32x1xf32>
    %c13_i32_20 = arith.constant 13 : i32
    %47 = vector.broadcast %c13_i32_20 : i32 to vector<32x1xi32>
    %48 = arith.cmpi slt, %9, %47 : vector<32x1xi32>
    %cst_21 = arith.constant 0.000000e+00 : f32
    %49 = vector.broadcast %cst_21 : f32 to vector<32x1xf32>
    %50 = arith.select %48, %49, %46 : vector<32x1xi1>, vector<32x1xf32>
    %c12_i32 = arith.constant 12 : i32
    %51 = tpu.dynamic_rotate %14 by %c12_i32 dim 0 : vector<32x1xf32>, i32 -> vector<32x1xf32>
    %c12_i32_22 = arith.constant 12 : i32
    %52 = vector.broadcast %c12_i32_22 : i32 to vector<32x1xi32>
    %53 = arith.cmpi slt, %9, %52 : vector<32x1xi32>
    %cst_23 = arith.constant 0.000000e+00 : f32
    %54 = vector.broadcast %cst_23 : f32 to vector<32x1xf32>
    %55 = arith.select %53, %54, %51 : vector<32x1xi1>, vector<32x1xf32>
    %c11_i32 = arith.constant 11 : i32
    %56 = tpu.dynamic_rotate %14 by %c11_i32 dim 0 : vector<32x1xf32>, i32 -> vector<32x1xf32>
    %c11_i32_24 = arith.constant 11 : i32
    %57 = vector.broadcast %c11_i32_24 : i32 to vector<32x1xi32>
    %58 = arith.cmpi slt, %9, %57 : vector<32x1xi32>
    %cst_25 = arith.constant 0.000000e+00 : f32
    %59 = vector.broadcast %cst_25 : f32 to vector<32x1xf32>
    %60 = arith.select %58, %59, %56 : vector<32x1xi1>, vector<32x1xf32>
    %c10_i32 = arith.constant 10 : i32
    %61 = tpu.dynamic_rotate %14 by %c10_i32 dim 0 : vector<32x1xf32>, i32 -> vector<32x1xf32>
    %c10_i32_26 = arith.constant 10 : i32
    %62 = vector.broadcast %c10_i32_26 : i32 to vector<32x1xi32>
    %63 = arith.cmpi slt, %9, %62 : vector<32x1xi32>
    %cst_27 = arith.constant 0.000000e+00 : f32
    %64 = vector.broadcast %cst_27 : f32 to vector<32x1xf32>
    %65 = arith.select %63, %64, %61 : vector<32x1xi1>, vector<32x1xf32>
    %c9_i32 = arith.constant 9 : i32
    %66 = tpu.dynamic_rotate %14 by %c9_i32 dim 0 : vector<32x1xf32>, i32 -> vector<32x1xf32>
    %c9_i32_28 = arith.constant 9 : i32
    %67 = vector.broadcast %c9_i32_28 : i32 to vector<32x1xi32>
    %68 = arith.cmpi slt, %9, %67 : vector<32x1xi32>
    %cst_29 = arith.constant 0.000000e+00 : f32
    %69 = vector.broadcast %cst_29 : f32 to vector<32x1xf32>
    %70 = arith.select %68, %69, %66 : vector<32x1xi1>, vector<32x1xf32>
    %c8_i32 = arith.constant 8 : i32
    %71 = tpu.dynamic_rotate %14 by %c8_i32 dim 0 : vector<32x1xf32>, i32 -> vector<32x1xf32>
    %c8_i32_30 = arith.constant 8 : i32
    %72 = vector.broadcast %c8_i32_30 : i32 to vector<32x1xi32>
    %73 = arith.cmpi slt, %9, %72 : vector<32x1xi32>
    %cst_31 = arith.constant 0.000000e+00 : f32
    %74 = vector.broadcast %cst_31 : f32 to vector<32x1xf32>
    %75 = arith.select %73, %74, %71 : vector<32x1xi1>, vector<32x1xf32>
    %c7_i32 = arith.constant 7 : i32
    %76 = tpu.dynamic_rotate %14 by %c7_i32 dim 0 : vector<32x1xf32>, i32 -> vector<32x1xf32>
    %c7_i32_32 = arith.constant 7 : i32
    %77 = vector.broadcast %c7_i32_32 : i32 to vector<32x1xi32>
    %78 = arith.cmpi slt, %9, %77 : vector<32x1xi32>
    %cst_33 = arith.constant 0.000000e+00 : f32
    %79 = vector.broadcast %cst_33 : f32 to vector<32x1xf32>
    %80 = arith.select %78, %79, %76 : vector<32x1xi1>, vector<32x1xf32>
    %c6_i32 = arith.constant 6 : i32
    %81 = tpu.dynamic_rotate %14 by %c6_i32 dim 0 : vector<32x1xf32>, i32 -> vector<32x1xf32>
    %c6_i32_34 = arith.constant 6 : i32
    %82 = vector.broadcast %c6_i32_34 : i32 to vector<32x1xi32>
    %83 = arith.cmpi slt, %9, %82 : vector<32x1xi32>
    %cst_35 = arith.constant 0.000000e+00 : f32
    %84 = vector.broadcast %cst_35 : f32 to vector<32x1xf32>
    %85 = arith.select %83, %84, %81 : vector<32x1xi1>, vector<32x1xf32>
    %c5_i32 = arith.constant 5 : i32
    %86 = tpu.dynamic_rotate %14 by %c5_i32 dim 0 : vector<32x1xf32>, i32 -> vector<32x1xf32>
    %c5_i32_36 = arith.constant 5 : i32
    %87 = vector.broadcast %c5_i32_36 : i32 to vector<32x1xi32>
    %88 = arith.cmpi slt, %9, %87 : vector<32x1xi32>
    %cst_37 = arith.constant 0.000000e+00 : f32
    %89 = vector.broadcast %cst_37 : f32 to vector<32x1xf32>
    %90 = arith.select %88, %89, %86 : vector<32x1xi1>, vector<32x1xf32>
    %c4_i32 = arith.constant 4 : i32
    %91 = tpu.dynamic_rotate %14 by %c4_i32 dim 0 : vector<32x1xf32>, i32 -> vector<32x1xf32>
    %c4_i32_38 = arith.constant 4 : i32
    %92 = vector.broadcast %c4_i32_38 : i32 to vector<32x1xi32>
    %93 = arith.cmpi slt, %9, %92 : vector<32x1xi32>
    %cst_39 = arith.constant 0.000000e+00 : f32
    %94 = vector.broadcast %cst_39 : f32 to vector<32x1xf32>
    %95 = arith.select %93, %94, %91 : vector<32x1xi1>, vector<32x1xf32>
    %c3_i32 = arith.constant 3 : i32
    %96 = tpu.dynamic_rotate %14 by %c3_i32 dim 0 : vector<32x1xf32>, i32 -> vector<32x1xf32>
    %c3_i32_40 = arith.constant 3 : i32
    %97 = vector.broadcast %c3_i32_40 : i32 to vector<32x1xi32>
    %98 = arith.cmpi slt, %9, %97 : vector<32x1xi32>
    %cst_41 = arith.constant 0.000000e+00 : f32
    %99 = vector.broadcast %cst_41 : f32 to vector<32x1xf32>
    %100 = arith.select %98, %99, %96 : vector<32x1xi1>, vector<32x1xf32>
    %c2_i32 = arith.constant 2 : i32
    %101 = tpu.dynamic_rotate %14 by %c2_i32 dim 0 : vector<32x1xf32>, i32 -> vector<32x1xf32>
    %c2_i32_42 = arith.constant 2 : i32
    %102 = vector.broadcast %c2_i32_42 : i32 to vector<32x1xi32>
    %103 = arith.cmpi slt, %9, %102 : vector<32x1xi32>
    %cst_43 = arith.constant 0.000000e+00 : f32
    %104 = vector.broadcast %cst_43 : f32 to vector<32x1xf32>
    %105 = arith.select %103, %104, %101 : vector<32x1xi1>, vector<32x1xf32>
    %c1_i32_44 = arith.constant 1 : i32
    %106 = tpu.dynamic_rotate %14 by %c1_i32_44 dim 0 : vector<32x1xf32>, i32 -> vector<32x1xf32>
    %c1_i32_45 = arith.constant 1 : i32
    %107 = vector.broadcast %c1_i32_45 : i32 to vector<32x1xi32>
    %108 = arith.cmpi slt, %9, %107 : vector<32x1xi32>
    %cst_46 = arith.constant 0.000000e+00 : f32
    %109 = vector.broadcast %cst_46 : f32 to vector<32x1xf32>
    %110 = arith.select %108, %109, %106 : vector<32x1xi1>, vector<32x1xf32>
    %c31_i32_47 = arith.constant 31 : i32
    %111 = tpu.dynamic_rotate %14 by %c31_i32_47 dim 0 : vector<32x1xf32>, i32 -> vector<32x1xf32>
    %c15_i32_48 = arith.constant 15 : i32
    %112 = vector.broadcast %c15_i32_48 : i32 to vector<32x1xi32>
    %113 = arith.cmpi sge, %9, %112 : vector<32x1xi32>
    %cst_49 = arith.constant 0.000000e+00 : f32
    %114 = vector.broadcast %cst_49 : f32 to vector<32x1xf32>
    %115 = arith.select %113, %114, %111 : vector<32x1xi1>, vector<32x1xf32>
    %c30_i32 = arith.constant 30 : i32
    %116 = tpu.dynamic_rotate %14 by %c30_i32 dim 0 : vector<32x1xf32>, i32 -> vector<32x1xf32>
    %c14_i32_50 = arith.constant 14 : i32
    %117 = vector.broadcast %c14_i32_50 : i32 to vector<32x1xi32>
    %118 = arith.cmpi sge, %9, %117 : vector<32x1xi32>
    %cst_51 = arith.constant 0.000000e+00 : f32
    %119 = vector.broadcast %cst_51 : f32 to vector<32x1xf32>
    %120 = arith.select %118, %119, %116 : vector<32x1xi1>, vector<32x1xf32>
    %c29_i32 = arith.constant 29 : i32
    %121 = tpu.dynamic_rotate %14 by %c29_i32 dim 0 : vector<32x1xf32>, i32 -> vector<32x1xf32>
    %c13_i32_52 = arith.constant 13 : i32
    %122 = vector.broadcast %c13_i32_52 : i32 to vector<32x1xi32>
    %123 = arith.cmpi sge, %9, %122 : vector<32x1xi32>
    %cst_53 = arith.constant 0.000000e+00 : f32
    %124 = vector.broadcast %cst_53 : f32 to vector<32x1xf32>
    %125 = arith.select %123, %124, %121 : vector<32x1xi1>, vector<32x1xf32>
    %c28_i32 = arith.constant 28 : i32
    %126 = tpu.dynamic_rotate %14 by %c28_i32 dim 0 : vector<32x1xf32>, i32 -> vector<32x1xf32>
    %c12_i32_54 = arith.constant 12 : i32
    %127 = vector.broadcast %c12_i32_54 : i32 to vector<32x1xi32>
    %128 = arith.cmpi sge, %9, %127 : vector<32x1xi32>
    %cst_55 = arith.constant 0.000000e+00 : f32
    %129 = vector.broadcast %cst_55 : f32 to vector<32x1xf32>
    %130 = arith.select %128, %129, %126 : vector<32x1xi1>, vector<32x1xf32>
    %c27_i32 = arith.constant 27 : i32
    %131 = tpu.dynamic_rotate %14 by %c27_i32 dim 0 : vector<32x1xf32>, i32 -> vector<32x1xf32>
    %c11_i32_56 = arith.constant 11 : i32
    %132 = vector.broadcast %c11_i32_56 : i32 to vector<32x1xi32>
    %133 = arith.cmpi sge, %9, %132 : vector<32x1xi32>
    %cst_57 = arith.constant 0.000000e+00 : f32
    %134 = vector.broadcast %cst_57 : f32 to vector<32x1xf32>
    %135 = arith.select %133, %134, %131 : vector<32x1xi1>, vector<32x1xf32>
    %c26_i32 = arith.constant 26 : i32
    %136 = tpu.dynamic_rotate %14 by %c26_i32 dim 0 : vector<32x1xf32>, i32 -> vector<32x1xf32>
    %c10_i32_58 = arith.constant 10 : i32
    %137 = vector.broadcast %c10_i32_58 : i32 to vector<32x1xi32>
    %138 = arith.cmpi sge, %9, %137 : vector<32x1xi32>
    %cst_59 = arith.constant 0.000000e+00 : f32
    %139 = vector.broadcast %cst_59 : f32 to vector<32x1xf32>
    %140 = arith.select %138, %139, %136 : vector<32x1xi1>, vector<32x1xf32>
    %c25_i32 = arith.constant 25 : i32
    %141 = tpu.dynamic_rotate %14 by %c25_i32 dim 0 : vector<32x1xf32>, i32 -> vector<32x1xf32>
    %c9_i32_60 = arith.constant 9 : i32
    %142 = vector.broadcast %c9_i32_60 : i32 to vector<32x1xi32>
    %143 = arith.cmpi sge, %9, %142 : vector<32x1xi32>
    %cst_61 = arith.constant 0.000000e+00 : f32
    %144 = vector.broadcast %cst_61 : f32 to vector<32x1xf32>
    %145 = arith.select %143, %144, %141 : vector<32x1xi1>, vector<32x1xf32>
    %c24_i32 = arith.constant 24 : i32
    %146 = tpu.dynamic_rotate %14 by %c24_i32 dim 0 : vector<32x1xf32>, i32 -> vector<32x1xf32>
    %c8_i32_62 = arith.constant 8 : i32
    %147 = vector.broadcast %c8_i32_62 : i32 to vector<32x1xi32>
    %148 = arith.cmpi sge, %9, %147 : vector<32x1xi32>
    %cst_63 = arith.constant 0.000000e+00 : f32
    %149 = vector.broadcast %cst_63 : f32 to vector<32x1xf32>
    %150 = arith.select %148, %149, %146 : vector<32x1xi1>, vector<32x1xf32>
    %c23_i32 = arith.constant 23 : i32
    %151 = tpu.dynamic_rotate %14 by %c23_i32 dim 0 : vector<32x1xf32>, i32 -> vector<32x1xf32>
    %c7_i32_64 = arith.constant 7 : i32
    %152 = vector.broadcast %c7_i32_64 : i32 to vector<32x1xi32>
    %153 = arith.cmpi sge, %9, %152 : vector<32x1xi32>
    %cst_65 = arith.constant 0.000000e+00 : f32
    %154 = vector.broadcast %cst_65 : f32 to vector<32x1xf32>
    %155 = arith.select %153, %154, %151 : vector<32x1xi1>, vector<32x1xf32>
    %c22_i32 = arith.constant 22 : i32
    %156 = tpu.dynamic_rotate %14 by %c22_i32 dim 0 : vector<32x1xf32>, i32 -> vector<32x1xf32>
    %c6_i32_66 = arith.constant 6 : i32
    %157 = vector.broadcast %c6_i32_66 : i32 to vector<32x1xi32>
    %158 = arith.cmpi sge, %9, %157 : vector<32x1xi32>
    %cst_67 = arith.constant 0.000000e+00 : f32
    %159 = vector.broadcast %cst_67 : f32 to vector<32x1xf32>
    %160 = arith.select %158, %159, %156 : vector<32x1xi1>, vector<32x1xf32>
    %c21_i32 = arith.constant 21 : i32
    %161 = tpu.dynamic_rotate %14 by %c21_i32 dim 0 : vector<32x1xf32>, i32 -> vector<32x1xf32>
    %c5_i32_68 = arith.constant 5 : i32
    %162 = vector.broadcast %c5_i32_68 : i32 to vector<32x1xi32>
    %163 = arith.cmpi sge, %9, %162 : vector<32x1xi32>
    %cst_69 = arith.constant 0.000000e+00 : f32
    %164 = vector.broadcast %cst_69 : f32 to vector<32x1xf32>
    %165 = arith.select %163, %164, %161 : vector<32x1xi1>, vector<32x1xf32>
    %c20_i32 = arith.constant 20 : i32
    %166 = tpu.dynamic_rotate %14 by %c20_i32 dim 0 : vector<32x1xf32>, i32 -> vector<32x1xf32>
    %c4_i32_70 = arith.constant 4 : i32
    %167 = vector.broadcast %c4_i32_70 : i32 to vector<32x1xi32>
    %168 = arith.cmpi sge, %9, %167 : vector<32x1xi32>
    %cst_71 = arith.constant 0.000000e+00 : f32
    %169 = vector.broadcast %cst_71 : f32 to vector<32x1xf32>
    %170 = arith.select %168, %169, %166 : vector<32x1xi1>, vector<32x1xf32>
    %c19_i32 = arith.constant 19 : i32
    %171 = tpu.dynamic_rotate %14 by %c19_i32 dim 0 : vector<32x1xf32>, i32 -> vector<32x1xf32>
    %c3_i32_72 = arith.constant 3 : i32
    %172 = vector.broadcast %c3_i32_72 : i32 to vector<32x1xi32>
    %173 = arith.cmpi sge, %9, %172 : vector<32x1xi32>
    %cst_73 = arith.constant 0.000000e+00 : f32
    %174 = vector.broadcast %cst_73 : f32 to vector<32x1xf32>
    %175 = arith.select %173, %174, %171 : vector<32x1xi1>, vector<32x1xf32>
    %c18_i32 = arith.constant 18 : i32
    %176 = tpu.dynamic_rotate %14 by %c18_i32 dim 0 : vector<32x1xf32>, i32 -> vector<32x1xf32>
    %c2_i32_74 = arith.constant 2 : i32
    %177 = vector.broadcast %c2_i32_74 : i32 to vector<32x1xi32>
    %178 = arith.cmpi sge, %9, %177 : vector<32x1xi32>
    %cst_75 = arith.constant 0.000000e+00 : f32
    %179 = vector.broadcast %cst_75 : f32 to vector<32x1xf32>
    %180 = arith.select %178, %179, %176 : vector<32x1xi1>, vector<32x1xf32>
    %c17_i32 = arith.constant 17 : i32
    %181 = tpu.dynamic_rotate %14 by %c17_i32 dim 0 : vector<32x1xf32>, i32 -> vector<32x1xf32>
    %c1_i32_76 = arith.constant 1 : i32
    %182 = vector.broadcast %c1_i32_76 : i32 to vector<32x1xi32>
    %183 = arith.cmpi sge, %9, %182 : vector<32x1xi32>
    %cst_77 = arith.constant 0.000000e+00 : f32
    %184 = vector.broadcast %cst_77 : f32 to vector<32x1xf32>
    %185 = arith.select %183, %184, %181 : vector<32x1xi1>, vector<32x1xf32>
    %c16_i32_78 = arith.constant 16 : i32
    %186 = tpu.dynamic_rotate %14 by %c16_i32_78 dim 0 : vector<32x1xf32>, i32 -> vector<32x1xf32>
    %c0_i32_79 = arith.constant 0 : i32
    %187 = vector.broadcast %c0_i32_79 : i32 to vector<32x1xi32>
    %188 = arith.cmpi sge, %9, %187 : vector<32x1xi32>
    %cst_80 = arith.constant 0.000000e+00 : f32
    %189 = vector.broadcast %cst_80 : f32 to vector<32x1xf32>
    %190 = arith.select %188, %189, %186 : vector<32x1xi1>, vector<32x1xf32>
    %191 = tpu.concatenate %35, %40, %45, %50, %55, %60, %65, %70, %75, %80, %85, %90, %95, %100, %105, %110 in 1 : vector<32x1xf32>, vector<32x1xf32>, vector<32x1xf32>, vector<32x1xf32>, vector<32x1xf32>, vector<32x1xf32>, vector<32x1xf32>, vector<32x1xf32>, vector<32x1xf32>, vector<32x1xf32>, vector<32x1xf32>, vector<32x1xf32>, vector<32x1xf32>, vector<32x1xf32>, vector<32x1xf32>, vector<32x1xf32> -> vector<32x16xf32>
    %192 = tpu.concatenate %14, %115, %120, %125, %130, %135, %140, %145, %150, %155, %160, %165, %170, %175, %180, %185 in 1 : vector<32x1xf32>, vector<32x1xf32>, vector<32x1xf32>, vector<32x1xf32>, vector<32x1xf32>, vector<32x1xf32>, vector<32x1xf32>, vector<32x1xf32>, vector<32x1xf32>, vector<32x1xf32>, vector<32x1xf32>, vector<32x1xf32>, vector<32x1xf32>, vector<32x1xf32>, vector<32x1xf32>, vector<32x1xf32> -> vector<32x16xf32>
    %193 = tpu.concatenate %190, %10 in 1 : vector<32x1xf32>, vector<32x95xf32> -> vector<32x96xf32>
    %194 = tpu.concatenate %191, %192, %193 in 1 : vector<32x16xf32>, vector<32x16xf32>, vector<32x96xf32> -> vector<32x128xf32>
    %195 = arith.truncf %194 : vector<32x128xf32> to vector<32x128xbf16>
    %c0_81 = arith.constant 0 : index
    %c0_82 = arith.constant 0 : index
    %c0_83 = arith.constant 0 : index
    %196 = vector.load %arg4[%c0_81, %c0_82, %c0_83] : memref<2x128x128xbf16, #tpu.memory_space<vmem>>, vector<1x128x128xbf16>
    %197 = vector.shape_cast %196 : vector<1x128x128xbf16> to vector<128x128xbf16>
    %cst_84 = arith.constant dense<0.000000e+00> : vector<32x128xf32>
    %198 = tpu.matmul %195, %197, %cst_84 {dimension_numbers = #tpu.dot_dimension_numbers<[1], [0], [0], [1], [0, 0, 1, 1], [], []>} : vector<32x128xbf16>, vector<128x128xbf16>, vector<32x128xf32> -> vector<32x128xf32>
    %199 = arith.truncf %30 : vector<32x128xf32> to vector<32x128xbf16>
    %c0_85 = arith.constant 0 : index
    %c0_86 = arith.constant 0 : index
    %c0_87 = arith.constant 0 : index
    %200 = vector.load %arg5[%c0_85, %c0_86, %c0_87] : memref<2x128x128xbf16, #tpu.memory_space<vmem>>, vector<1x128x128xbf16>
    %201 = vector.shape_cast %200 : vector<1x128x128xbf16> to vector<128x128xbf16>
    %cst_88 = arith.constant dense<0.000000e+00> : vector<32x128xf32>
    %202 = tpu.matmul %199, %201, %cst_88 {dimension_numbers = #tpu.dot_dimension_numbers<[1], [0], [0], [1], [0, 0, 1, 1], [], []>} : vector<32x128xbf16>, vector<128x128xbf16>, vector<32x128xf32> -> vector<32x128xf32>
    %203 = arith.addf %198, %202 : vector<32x128xf32>
    %cst_89 = arith.constant dense<0.000000e+00> : vector<128xf32>
    %204 = vector.multi_reduction <add>, %203, %cst_89 [0] : vector<32x128xf32> to vector<128xf32>
    %205 = vector.shape_cast %204 : vector<128xf32> to vector<1x128xf32>
    %cst_90 = arith.constant 3.125000e-02 : f32
    %206 = vector.broadcast %cst_90 : f32 to vector<1x128xf32>
    %207 = arith.mulf %205, %206 : vector<1x128xf32>
    %208 = vector.broadcast %207 : vector<1x128xf32> to vector<32x128xf32>
    %209 = arith.subf %203, %208 : vector<32x128xf32>
    %210 = arith.mulf %209, %209 : vector<32x128xf32>
    %cst_91 = arith.constant dense<0.000000e+00> : vector<128xf32>
    %211 = vector.multi_reduction <add>, %210, %cst_91 [0] : vector<32x128xf32> to vector<128xf32>
    %212 = vector.shape_cast %211 : vector<128xf32> to vector<1x128xf32>
    %cst_92 = arith.constant 3.125000e-02 : f32
    %213 = vector.broadcast %cst_92 : f32 to vector<1x128xf32>
    %214 = arith.mulf %212, %213 : vector<1x128xf32>
    %cst_93 = arith.constant 9.99999974E-6 : f32
    %215 = vector.broadcast %cst_93 : f32 to vector<1x128xf32>
    %216 = arith.addf %214, %215 : vector<1x128xf32>
    %217 = math.rsqrt %216 : vector<1x128xf32>
    %218 = vector.broadcast %217 : vector<1x128xf32> to vector<32x128xf32>
    %219 = arith.mulf %209, %218 : vector<32x128xf32>
    %c0_94 = arith.constant 0 : index
    %c0_95 = arith.constant 0 : index
    %c0_96 = arith.constant 0 : index
    %220 = vector.load %arg6[%c0_94, %c0_95, %c0_96] : memref<2x1x128xf32, #tpu.memory_space<vmem>>, vector<1x1x128xf32>
    %221 = vector.shape_cast %220 : vector<1x1x128xf32> to vector<1x128xf32>
    %222 = vector.broadcast %221 : vector<1x128xf32> to vector<32x128xf32>
    %223 = arith.mulf %219, %222 : vector<32x128xf32>
    %c0_97 = arith.constant 0 : index
    %c0_98 = arith.constant 0 : index
    %c0_99 = arith.constant 0 : index
    %224 = vector.load %arg7[%c0_97, %c0_98, %c0_99] : memref<2x1x128xf32, #tpu.memory_space<vmem>>, vector<1x1x128xf32>
    %225 = vector.shape_cast %224 : vector<1x1x128xf32> to vector<1x128xf32>
    %226 = vector.broadcast %225 : vector<1x128xf32> to vector<32x128xf32>
    %227 = arith.addf %223, %226 : vector<32x128xf32>
    %cst_100 = arith.constant 0.000000e+00 : f32
    %228 = vector.broadcast %cst_100 : f32 to vector<32x128xf32>
    %229 = arith.maximumf %227, %228 : vector<32x128xf32>
    %230 = arith.addf %229, %7 : vector<32x128xf32>
    %cst_101 = arith.constant 0.000000e+00 : f32
    %231 = vector.broadcast %cst_101 : f32 to vector<32x128xf32>
    %232 = arith.maximumf %230, %231 : vector<32x128xf32>
    %233 = arith.truncf %232 : vector<32x128xf32> to vector<32x128xbf16>
    %c1 = arith.constant 1 : index
    %c0_102 = arith.constant 0 : index
    %c0_103 = arith.constant 0 : index
    %234 = vector.load %arg3[%c1, %c0_102, %c0_103] : memref<2x128x1xbf16, #tpu.memory_space<vmem>>, vector<1x128x1xbf16>
    %235 = vector.shape_cast %234 : vector<1x128x1xbf16> to vector<128x1xbf16>
    %cst_104 = arith.constant dense<0.000000e+00> : vector<32x1xf32>
    %236 = tpu.matmul %233, %235, %cst_104 {dimension_numbers = #tpu.dot_dimension_numbers<[1], [0], [0], [1], [0, 0, 1, 1], [], []>} : vector<32x128xbf16>, vector<128x1xbf16>, vector<32x1xf32> -> vector<32x1xf32>
    %c0_i32_105 = arith.constant 0 : i32
    %237 = vector.broadcast %c0_i32_105 : i32 to vector<32x1xi32>
    %238 = arith.cmpi eq, %9, %237 : vector<32x1xi32>
    %c1_i32_106 = arith.constant 1 : i32
    %239 = tpu.dynamic_rotate %232 by %c1_i32_106 dim 0 : vector<32x128xf32>, i32 -> vector<32x128xf32>
    %cst_107 = arith.constant 0xFF800000 : f32
    %240 = vector.shape_cast %238 : vector<32x1xi1> to vector<32x1xi1>
    %241 = vector.broadcast %240 : vector<32x1xi1> to vector<32x128xi1>
    %242 = vector.broadcast %cst_107 : f32 to vector<32x128xf32>
    %243 = arith.select %241, %242, %239 : vector<32x128xi1>, vector<32x128xf32>
    %244 = arith.maximumf %232, %243 : vector<32x128xf32>
    %c15_i32_108 = arith.constant 15 : i32
    %245 = vector.broadcast %c15_i32_108 : i32 to vector<32x1xi32>
    %246 = arith.cmpi eq, %9, %245 : vector<32x1xi32>
    %c31_i32_109 = arith.constant 31 : i32
    %247 = tpu.dynamic_rotate %232 by %c31_i32_109 dim 0 : vector<32x128xf32>, i32 -> vector<32x128xf32>
    %cst_110 = arith.constant 0xFF800000 : f32
    %248 = vector.shape_cast %246 : vector<32x1xi1> to vector<32x1xi1>
    %249 = vector.broadcast %248 : vector<32x1xi1> to vector<32x128xi1>
    %250 = vector.broadcast %cst_110 : f32 to vector<32x128xf32>
    %251 = arith.select %249, %250, %247 : vector<32x128xi1>, vector<32x128xf32>
    %252 = arith.maximumf %244, %251 : vector<32x128xf32>
    %c16_i32_111 = arith.constant 16 : i32
    %253 = tpu.dynamic_rotate %236 by %c16_i32_111 dim 0 : vector<32x1xf32>, i32 -> vector<32x1xf32>
    %c16_i32_112 = arith.constant 16 : i32
    %254 = vector.broadcast %c16_i32_112 : i32 to vector<32x1xi32>
    %255 = arith.cmpi slt, %9, %254 : vector<32x1xi32>
    %cst_113 = arith.constant 0.000000e+00 : f32
    %256 = vector.broadcast %cst_113 : f32 to vector<32x1xf32>
    %257 = arith.select %255, %256, %253 : vector<32x1xi1>, vector<32x1xf32>
    %c15_i32_114 = arith.constant 15 : i32
    %258 = tpu.dynamic_rotate %236 by %c15_i32_114 dim 0 : vector<32x1xf32>, i32 -> vector<32x1xf32>
    %c15_i32_115 = arith.constant 15 : i32
    %259 = vector.broadcast %c15_i32_115 : i32 to vector<32x1xi32>
    %260 = arith.cmpi slt, %9, %259 : vector<32x1xi32>
    %cst_116 = arith.constant 0.000000e+00 : f32
    %261 = vector.broadcast %cst_116 : f32 to vector<32x1xf32>
    %262 = arith.select %260, %261, %258 : vector<32x1xi1>, vector<32x1xf32>
    %c14_i32_117 = arith.constant 14 : i32
    %263 = tpu.dynamic_rotate %236 by %c14_i32_117 dim 0 : vector<32x1xf32>, i32 -> vector<32x1xf32>
    %c14_i32_118 = arith.constant 14 : i32
    %264 = vector.broadcast %c14_i32_118 : i32 to vector<32x1xi32>
    %265 = arith.cmpi slt, %9, %264 : vector<32x1xi32>
    %cst_119 = arith.constant 0.000000e+00 : f32
    %266 = vector.broadcast %cst_119 : f32 to vector<32x1xf32>
    %267 = arith.select %265, %266, %263 : vector<32x1xi1>, vector<32x1xf32>
    %c13_i32_120 = arith.constant 13 : i32
    %268 = tpu.dynamic_rotate %236 by %c13_i32_120 dim 0 : vector<32x1xf32>, i32 -> vector<32x1xf32>
    %c13_i32_121 = arith.constant 13 : i32
    %269 = vector.broadcast %c13_i32_121 : i32 to vector<32x1xi32>
    %270 = arith.cmpi slt, %9, %269 : vector<32x1xi32>
    %cst_122 = arith.constant 0.000000e+00 : f32
    %271 = vector.broadcast %cst_122 : f32 to vector<32x1xf32>
    %272 = arith.select %270, %271, %268 : vector<32x1xi1>, vector<32x1xf32>
    %c12_i32_123 = arith.constant 12 : i32
    %273 = tpu.dynamic_rotate %236 by %c12_i32_123 dim 0 : vector<32x1xf32>, i32 -> vector<32x1xf32>
    %c12_i32_124 = arith.constant 12 : i32
    %274 = vector.broadcast %c12_i32_124 : i32 to vector<32x1xi32>
    %275 = arith.cmpi slt, %9, %274 : vector<32x1xi32>
    %cst_125 = arith.constant 0.000000e+00 : f32
    %276 = vector.broadcast %cst_125 : f32 to vector<32x1xf32>
    %277 = arith.select %275, %276, %273 : vector<32x1xi1>, vector<32x1xf32>
    %c11_i32_126 = arith.constant 11 : i32
    %278 = tpu.dynamic_rotate %236 by %c11_i32_126 dim 0 : vector<32x1xf32>, i32 -> vector<32x1xf32>
    %c11_i32_127 = arith.constant 11 : i32
    %279 = vector.broadcast %c11_i32_127 : i32 to vector<32x1xi32>
    %280 = arith.cmpi slt, %9, %279 : vector<32x1xi32>
    %cst_128 = arith.constant 0.000000e+00 : f32
    %281 = vector.broadcast %cst_128 : f32 to vector<32x1xf32>
    %282 = arith.select %280, %281, %278 : vector<32x1xi1>, vector<32x1xf32>
    %c10_i32_129 = arith.constant 10 : i32
    %283 = tpu.dynamic_rotate %236 by %c10_i32_129 dim 0 : vector<32x1xf32>, i32 -> vector<32x1xf32>
    %c10_i32_130 = arith.constant 10 : i32
    %284 = vector.broadcast %c10_i32_130 : i32 to vector<32x1xi32>
    %285 = arith.cmpi slt, %9, %284 : vector<32x1xi32>
    %cst_131 = arith.constant 0.000000e+00 : f32
    %286 = vector.broadcast %cst_131 : f32 to vector<32x1xf32>
    %287 = arith.select %285, %286, %283 : vector<32x1xi1>, vector<32x1xf32>
    %c9_i32_132 = arith.constant 9 : i32
    %288 = tpu.dynamic_rotate %236 by %c9_i32_132 dim 0 : vector<32x1xf32>, i32 -> vector<32x1xf32>
    %c9_i32_133 = arith.constant 9 : i32
    %289 = vector.broadcast %c9_i32_133 : i32 to vector<32x1xi32>
    %290 = arith.cmpi slt, %9, %289 : vector<32x1xi32>
    %cst_134 = arith.constant 0.000000e+00 : f32
    %291 = vector.broadcast %cst_134 : f32 to vector<32x1xf32>
    %292 = arith.select %290, %291, %288 : vector<32x1xi1>, vector<32x1xf32>
    %c8_i32_135 = arith.constant 8 : i32
    %293 = tpu.dynamic_rotate %236 by %c8_i32_135 dim 0 : vector<32x1xf32>, i32 -> vector<32x1xf32>
    %c8_i32_136 = arith.constant 8 : i32
    %294 = vector.broadcast %c8_i32_136 : i32 to vector<32x1xi32>
    %295 = arith.cmpi slt, %9, %294 : vector<32x1xi32>
    %cst_137 = arith.constant 0.000000e+00 : f32
    %296 = vector.broadcast %cst_137 : f32 to vector<32x1xf32>
    %297 = arith.select %295, %296, %293 : vector<32x1xi1>, vector<32x1xf32>
    %c7_i32_138 = arith.constant 7 : i32
    %298 = tpu.dynamic_rotate %236 by %c7_i32_138 dim 0 : vector<32x1xf32>, i32 -> vector<32x1xf32>
    %c7_i32_139 = arith.constant 7 : i32
    %299 = vector.broadcast %c7_i32_139 : i32 to vector<32x1xi32>
    %300 = arith.cmpi slt, %9, %299 : vector<32x1xi32>
    %cst_140 = arith.constant 0.000000e+00 : f32
    %301 = vector.broadcast %cst_140 : f32 to vector<32x1xf32>
    %302 = arith.select %300, %301, %298 : vector<32x1xi1>, vector<32x1xf32>
    %c6_i32_141 = arith.constant 6 : i32
    %303 = tpu.dynamic_rotate %236 by %c6_i32_141 dim 0 : vector<32x1xf32>, i32 -> vector<32x1xf32>
    %c6_i32_142 = arith.constant 6 : i32
    %304 = vector.broadcast %c6_i32_142 : i32 to vector<32x1xi32>
    %305 = arith.cmpi slt, %9, %304 : vector<32x1xi32>
    %cst_143 = arith.constant 0.000000e+00 : f32
    %306 = vector.broadcast %cst_143 : f32 to vector<32x1xf32>
    %307 = arith.select %305, %306, %303 : vector<32x1xi1>, vector<32x1xf32>
    %c5_i32_144 = arith.constant 5 : i32
    %308 = tpu.dynamic_rotate %236 by %c5_i32_144 dim 0 : vector<32x1xf32>, i32 -> vector<32x1xf32>
    %c5_i32_145 = arith.constant 5 : i32
    %309 = vector.broadcast %c5_i32_145 : i32 to vector<32x1xi32>
    %310 = arith.cmpi slt, %9, %309 : vector<32x1xi32>
    %cst_146 = arith.constant 0.000000e+00 : f32
    %311 = vector.broadcast %cst_146 : f32 to vector<32x1xf32>
    %312 = arith.select %310, %311, %308 : vector<32x1xi1>, vector<32x1xf32>
    %c4_i32_147 = arith.constant 4 : i32
    %313 = tpu.dynamic_rotate %236 by %c4_i32_147 dim 0 : vector<32x1xf32>, i32 -> vector<32x1xf32>
    %c4_i32_148 = arith.constant 4 : i32
    %314 = vector.broadcast %c4_i32_148 : i32 to vector<32x1xi32>
    %315 = arith.cmpi slt, %9, %314 : vector<32x1xi32>
    %cst_149 = arith.constant 0.000000e+00 : f32
    %316 = vector.broadcast %cst_149 : f32 to vector<32x1xf32>
    %317 = arith.select %315, %316, %313 : vector<32x1xi1>, vector<32x1xf32>
    %c3_i32_150 = arith.constant 3 : i32
    %318 = tpu.dynamic_rotate %236 by %c3_i32_150 dim 0 : vector<32x1xf32>, i32 -> vector<32x1xf32>
    %c3_i32_151 = arith.constant 3 : i32
    %319 = vector.broadcast %c3_i32_151 : i32 to vector<32x1xi32>
    %320 = arith.cmpi slt, %9, %319 : vector<32x1xi32>
    %cst_152 = arith.constant 0.000000e+00 : f32
    %321 = vector.broadcast %cst_152 : f32 to vector<32x1xf32>
    %322 = arith.select %320, %321, %318 : vector<32x1xi1>, vector<32x1xf32>
    %c2_i32_153 = arith.constant 2 : i32
    %323 = tpu.dynamic_rotate %236 by %c2_i32_153 dim 0 : vector<32x1xf32>, i32 -> vector<32x1xf32>
    %c2_i32_154 = arith.constant 2 : i32
    %324 = vector.broadcast %c2_i32_154 : i32 to vector<32x1xi32>
    %325 = arith.cmpi slt, %9, %324 : vector<32x1xi32>
    %cst_155 = arith.constant 0.000000e+00 : f32
    %326 = vector.broadcast %cst_155 : f32 to vector<32x1xf32>
    %327 = arith.select %325, %326, %323 : vector<32x1xi1>, vector<32x1xf32>
    %c1_i32_156 = arith.constant 1 : i32
    %328 = tpu.dynamic_rotate %236 by %c1_i32_156 dim 0 : vector<32x1xf32>, i32 -> vector<32x1xf32>
    %c1_i32_157 = arith.constant 1 : i32
    %329 = vector.broadcast %c1_i32_157 : i32 to vector<32x1xi32>
    %330 = arith.cmpi slt, %9, %329 : vector<32x1xi32>
    %cst_158 = arith.constant 0.000000e+00 : f32
    %331 = vector.broadcast %cst_158 : f32 to vector<32x1xf32>
    %332 = arith.select %330, %331, %328 : vector<32x1xi1>, vector<32x1xf32>
    %c31_i32_159 = arith.constant 31 : i32
    %333 = tpu.dynamic_rotate %236 by %c31_i32_159 dim 0 : vector<32x1xf32>, i32 -> vector<32x1xf32>
    %c15_i32_160 = arith.constant 15 : i32
    %334 = vector.broadcast %c15_i32_160 : i32 to vector<32x1xi32>
    %335 = arith.cmpi sge, %9, %334 : vector<32x1xi32>
    %cst_161 = arith.constant 0.000000e+00 : f32
    %336 = vector.broadcast %cst_161 : f32 to vector<32x1xf32>
    %337 = arith.select %335, %336, %333 : vector<32x1xi1>, vector<32x1xf32>
    %c30_i32_162 = arith.constant 30 : i32
    %338 = tpu.dynamic_rotate %236 by %c30_i32_162 dim 0 : vector<32x1xf32>, i32 -> vector<32x1xf32>
    %c14_i32_163 = arith.constant 14 : i32
    %339 = vector.broadcast %c14_i32_163 : i32 to vector<32x1xi32>
    %340 = arith.cmpi sge, %9, %339 : vector<32x1xi32>
    %cst_164 = arith.constant 0.000000e+00 : f32
    %341 = vector.broadcast %cst_164 : f32 to vector<32x1xf32>
    %342 = arith.select %340, %341, %338 : vector<32x1xi1>, vector<32x1xf32>
    %c29_i32_165 = arith.constant 29 : i32
    %343 = tpu.dynamic_rotate %236 by %c29_i32_165 dim 0 : vector<32x1xf32>, i32 -> vector<32x1xf32>
    %c13_i32_166 = arith.constant 13 : i32
    %344 = vector.broadcast %c13_i32_166 : i32 to vector<32x1xi32>
    %345 = arith.cmpi sge, %9, %344 : vector<32x1xi32>
    %cst_167 = arith.constant 0.000000e+00 : f32
    %346 = vector.broadcast %cst_167 : f32 to vector<32x1xf32>
    %347 = arith.select %345, %346, %343 : vector<32x1xi1>, vector<32x1xf32>
    %c28_i32_168 = arith.constant 28 : i32
    %348 = tpu.dynamic_rotate %236 by %c28_i32_168 dim 0 : vector<32x1xf32>, i32 -> vector<32x1xf32>
    %c12_i32_169 = arith.constant 12 : i32
    %349 = vector.broadcast %c12_i32_169 : i32 to vector<32x1xi32>
    %350 = arith.cmpi sge, %9, %349 : vector<32x1xi32>
    %cst_170 = arith.constant 0.000000e+00 : f32
    %351 = vector.broadcast %cst_170 : f32 to vector<32x1xf32>
    %352 = arith.select %350, %351, %348 : vector<32x1xi1>, vector<32x1xf32>
    %c27_i32_171 = arith.constant 27 : i32
    %353 = tpu.dynamic_rotate %236 by %c27_i32_171 dim 0 : vector<32x1xf32>, i32 -> vector<32x1xf32>
    %c11_i32_172 = arith.constant 11 : i32
    %354 = vector.broadcast %c11_i32_172 : i32 to vector<32x1xi32>
    %355 = arith.cmpi sge, %9, %354 : vector<32x1xi32>
    %cst_173 = arith.constant 0.000000e+00 : f32
    %356 = vector.broadcast %cst_173 : f32 to vector<32x1xf32>
    %357 = arith.select %355, %356, %353 : vector<32x1xi1>, vector<32x1xf32>
    %c26_i32_174 = arith.constant 26 : i32
    %358 = tpu.dynamic_rotate %236 by %c26_i32_174 dim 0 : vector<32x1xf32>, i32 -> vector<32x1xf32>
    %c10_i32_175 = arith.constant 10 : i32
    %359 = vector.broadcast %c10_i32_175 : i32 to vector<32x1xi32>
    %360 = arith.cmpi sge, %9, %359 : vector<32x1xi32>
    %cst_176 = arith.constant 0.000000e+00 : f32
    %361 = vector.broadcast %cst_176 : f32 to vector<32x1xf32>
    %362 = arith.select %360, %361, %358 : vector<32x1xi1>, vector<32x1xf32>
    %c25_i32_177 = arith.constant 25 : i32
    %363 = tpu.dynamic_rotate %236 by %c25_i32_177 dim 0 : vector<32x1xf32>, i32 -> vector<32x1xf32>
    %c9_i32_178 = arith.constant 9 : i32
    %364 = vector.broadcast %c9_i32_178 : i32 to vector<32x1xi32>
    %365 = arith.cmpi sge, %9, %364 : vector<32x1xi32>
    %cst_179 = arith.constant 0.000000e+00 : f32
    %366 = vector.broadcast %cst_179 : f32 to vector<32x1xf32>
    %367 = arith.select %365, %366, %363 : vector<32x1xi1>, vector<32x1xf32>
    %c24_i32_180 = arith.constant 24 : i32
    %368 = tpu.dynamic_rotate %236 by %c24_i32_180 dim 0 : vector<32x1xf32>, i32 -> vector<32x1xf32>
    %c8_i32_181 = arith.constant 8 : i32
    %369 = vector.broadcast %c8_i32_181 : i32 to vector<32x1xi32>
    %370 = arith.cmpi sge, %9, %369 : vector<32x1xi32>
    %cst_182 = arith.constant 0.000000e+00 : f32
    %371 = vector.broadcast %cst_182 : f32 to vector<32x1xf32>
    %372 = arith.select %370, %371, %368 : vector<32x1xi1>, vector<32x1xf32>
    %c23_i32_183 = arith.constant 23 : i32
    %373 = tpu.dynamic_rotate %236 by %c23_i32_183 dim 0 : vector<32x1xf32>, i32 -> vector<32x1xf32>
    %c7_i32_184 = arith.constant 7 : i32
    %374 = vector.broadcast %c7_i32_184 : i32 to vector<32x1xi32>
    %375 = arith.cmpi sge, %9, %374 : vector<32x1xi32>
    %cst_185 = arith.constant 0.000000e+00 : f32
    %376 = vector.broadcast %cst_185 : f32 to vector<32x1xf32>
    %377 = arith.select %375, %376, %373 : vector<32x1xi1>, vector<32x1xf32>
    %c22_i32_186 = arith.constant 22 : i32
    %378 = tpu.dynamic_rotate %236 by %c22_i32_186 dim 0 : vector<32x1xf32>, i32 -> vector<32x1xf32>
    %c6_i32_187 = arith.constant 6 : i32
    %379 = vector.broadcast %c6_i32_187 : i32 to vector<32x1xi32>
    %380 = arith.cmpi sge, %9, %379 : vector<32x1xi32>
    %cst_188 = arith.constant 0.000000e+00 : f32
    %381 = vector.broadcast %cst_188 : f32 to vector<32x1xf32>
    %382 = arith.select %380, %381, %378 : vector<32x1xi1>, vector<32x1xf32>
    %c21_i32_189 = arith.constant 21 : i32
    %383 = tpu.dynamic_rotate %236 by %c21_i32_189 dim 0 : vector<32x1xf32>, i32 -> vector<32x1xf32>
    %c5_i32_190 = arith.constant 5 : i32
    %384 = vector.broadcast %c5_i32_190 : i32 to vector<32x1xi32>
    %385 = arith.cmpi sge, %9, %384 : vector<32x1xi32>
    %cst_191 = arith.constant 0.000000e+00 : f32
    %386 = vector.broadcast %cst_191 : f32 to vector<32x1xf32>
    %387 = arith.select %385, %386, %383 : vector<32x1xi1>, vector<32x1xf32>
    %c20_i32_192 = arith.constant 20 : i32
    %388 = tpu.dynamic_rotate %236 by %c20_i32_192 dim 0 : vector<32x1xf32>, i32 -> vector<32x1xf32>
    %c4_i32_193 = arith.constant 4 : i32
    %389 = vector.broadcast %c4_i32_193 : i32 to vector<32x1xi32>
    %390 = arith.cmpi sge, %9, %389 : vector<32x1xi32>
    %cst_194 = arith.constant 0.000000e+00 : f32
    %391 = vector.broadcast %cst_194 : f32 to vector<32x1xf32>
    %392 = arith.select %390, %391, %388 : vector<32x1xi1>, vector<32x1xf32>
    %c19_i32_195 = arith.constant 19 : i32
    %393 = tpu.dynamic_rotate %236 by %c19_i32_195 dim 0 : vector<32x1xf32>, i32 -> vector<32x1xf32>
    %c3_i32_196 = arith.constant 3 : i32
    %394 = vector.broadcast %c3_i32_196 : i32 to vector<32x1xi32>
    %395 = arith.cmpi sge, %9, %394 : vector<32x1xi32>
    %cst_197 = arith.constant 0.000000e+00 : f32
    %396 = vector.broadcast %cst_197 : f32 to vector<32x1xf32>
    %397 = arith.select %395, %396, %393 : vector<32x1xi1>, vector<32x1xf32>
    %c18_i32_198 = arith.constant 18 : i32
    %398 = tpu.dynamic_rotate %236 by %c18_i32_198 dim 0 : vector<32x1xf32>, i32 -> vector<32x1xf32>
    %c2_i32_199 = arith.constant 2 : i32
    %399 = vector.broadcast %c2_i32_199 : i32 to vector<32x1xi32>
    %400 = arith.cmpi sge, %9, %399 : vector<32x1xi32>
    %cst_200 = arith.constant 0.000000e+00 : f32
    %401 = vector.broadcast %cst_200 : f32 to vector<32x1xf32>
    %402 = arith.select %400, %401, %398 : vector<32x1xi1>, vector<32x1xf32>
    %c17_i32_201 = arith.constant 17 : i32
    %403 = tpu.dynamic_rotate %236 by %c17_i32_201 dim 0 : vector<32x1xf32>, i32 -> vector<32x1xf32>
    %c1_i32_202 = arith.constant 1 : i32
    %404 = vector.broadcast %c1_i32_202 : i32 to vector<32x1xi32>
    %405 = arith.cmpi sge, %9, %404 : vector<32x1xi32>
    %cst_203 = arith.constant 0.000000e+00 : f32
    %406 = vector.broadcast %cst_203 : f32 to vector<32x1xf32>
    %407 = arith.select %405, %406, %403 : vector<32x1xi1>, vector<32x1xf32>
    %c16_i32_204 = arith.constant 16 : i32
    %408 = tpu.dynamic_rotate %236 by %c16_i32_204 dim 0 : vector<32x1xf32>, i32 -> vector<32x1xf32>
    %c0_i32_205 = arith.constant 0 : i32
    %409 = vector.broadcast %c0_i32_205 : i32 to vector<32x1xi32>
    %410 = arith.cmpi sge, %9, %409 : vector<32x1xi32>
    %cst_206 = arith.constant 0.000000e+00 : f32
    %411 = vector.broadcast %cst_206 : f32 to vector<32x1xf32>
    %412 = arith.select %410, %411, %408 : vector<32x1xi1>, vector<32x1xf32>
    %413 = tpu.concatenate %257, %262, %267, %272, %277, %282, %287, %292, %297, %302, %307, %312, %317, %322, %327, %332 in 1 : vector<32x1xf32>, vector<32x1xf32>, vector<32x1xf32>, vector<32x1xf32>, vector<32x1xf32>, vector<32x1xf32>, vector<32x1xf32>, vector<32x1xf32>, vector<32x1xf32>, vector<32x1xf32>, vector<32x1xf32>, vector<32x1xf32>, vector<32x1xf32>, vector<32x1xf32>, vector<32x1xf32>, vector<32x1xf32> -> vector<32x16xf32>
    %414 = tpu.concatenate %236, %337, %342, %347, %352, %357, %362, %367, %372, %377, %382, %387, %392, %397, %402, %407 in 1 : vector<32x1xf32>, vector<32x1xf32>, vector<32x1xf32>, vector<32x1xf32>, vector<32x1xf32>, vector<32x1xf32>, vector<32x1xf32>, vector<32x1xf32>, vector<32x1xf32>, vector<32x1xf32>, vector<32x1xf32>, vector<32x1xf32>, vector<32x1xf32>, vector<32x1xf32>, vector<32x1xf32>, vector<32x1xf32> -> vector<32x16xf32>
    %415 = tpu.concatenate %412, %10 in 1 : vector<32x1xf32>, vector<32x95xf32> -> vector<32x96xf32>
    %416 = tpu.concatenate %413, %414, %415 in 1 : vector<32x16xf32>, vector<32x16xf32>, vector<32x96xf32> -> vector<32x128xf32>
    %417 = arith.truncf %416 : vector<32x128xf32> to vector<32x128xbf16>
    %c1_207 = arith.constant 1 : index
    %c0_208 = arith.constant 0 : index
    %c0_209 = arith.constant 0 : index
    %418 = vector.load %arg4[%c1_207, %c0_208, %c0_209] : memref<2x128x128xbf16, #tpu.memory_space<vmem>>, vector<1x128x128xbf16>
    %419 = vector.shape_cast %418 : vector<1x128x128xbf16> to vector<128x128xbf16>
    %cst_210 = arith.constant dense<0.000000e+00> : vector<32x128xf32>
    %420 = tpu.matmul %417, %419, %cst_210 {dimension_numbers = #tpu.dot_dimension_numbers<[1], [0], [0], [1], [0, 0, 1, 1], [], []>} : vector<32x128xbf16>, vector<128x128xbf16>, vector<32x128xf32> -> vector<32x128xf32>
    %421 = arith.truncf %252 : vector<32x128xf32> to vector<32x128xbf16>
    %c1_211 = arith.constant 1 : index
    %c0_212 = arith.constant 0 : index
    %c0_213 = arith.constant 0 : index
    %422 = vector.load %arg5[%c1_211, %c0_212, %c0_213] : memref<2x128x128xbf16, #tpu.memory_space<vmem>>, vector<1x128x128xbf16>
    %423 = vector.shape_cast %422 : vector<1x128x128xbf16> to vector<128x128xbf16>
    %cst_214 = arith.constant dense<0.000000e+00> : vector<32x128xf32>
    %424 = tpu.matmul %421, %423, %cst_214 {dimension_numbers = #tpu.dot_dimension_numbers<[1], [0], [0], [1], [0, 0, 1, 1], [], []>} : vector<32x128xbf16>, vector<128x128xbf16>, vector<32x128xf32> -> vector<32x128xf32>
    %425 = arith.addf %420, %424 : vector<32x128xf32>
    %cst_215 = arith.constant dense<0.000000e+00> : vector<128xf32>
    %426 = vector.multi_reduction <add>, %425, %cst_215 [0] : vector<32x128xf32> to vector<128xf32>
    %427 = vector.shape_cast %426 : vector<128xf32> to vector<1x128xf32>
    %cst_216 = arith.constant 3.125000e-02 : f32
    %428 = vector.broadcast %cst_216 : f32 to vector<1x128xf32>
    %429 = arith.mulf %427, %428 : vector<1x128xf32>
    %430 = vector.broadcast %429 : vector<1x128xf32> to vector<32x128xf32>
    %431 = arith.subf %425, %430 : vector<32x128xf32>
    %432 = arith.mulf %431, %431 : vector<32x128xf32>
    %cst_217 = arith.constant dense<0.000000e+00> : vector<128xf32>
    %433 = vector.multi_reduction <add>, %432, %cst_217 [0] : vector<32x128xf32> to vector<128xf32>
    %434 = vector.shape_cast %433 : vector<128xf32> to vector<1x128xf32>
    %cst_218 = arith.constant 3.125000e-02 : f32
    %435 = vector.broadcast %cst_218 : f32 to vector<1x128xf32>
    %436 = arith.mulf %434, %435 : vector<1x128xf32>
    %cst_219 = arith.constant 9.99999974E-6 : f32
    %437 = vector.broadcast %cst_219 : f32 to vector<1x128xf32>
    %438 = arith.addf %436, %437 : vector<1x128xf32>
    %439 = math.rsqrt %438 : vector<1x128xf32>
    %440 = vector.broadcast %439 : vector<1x128xf32> to vector<32x128xf32>
    %441 = arith.mulf %431, %440 : vector<32x128xf32>
    %c1_220 = arith.constant 1 : index
    %c0_221 = arith.constant 0 : index
    %c0_222 = arith.constant 0 : index
    %442 = vector.load %arg6[%c1_220, %c0_221, %c0_222] : memref<2x1x128xf32, #tpu.memory_space<vmem>>, vector<1x1x128xf32>
    %443 = vector.shape_cast %442 : vector<1x1x128xf32> to vector<1x128xf32>
    %444 = vector.broadcast %443 : vector<1x128xf32> to vector<32x128xf32>
    %445 = arith.mulf %441, %444 : vector<32x128xf32>
    %c1_223 = arith.constant 1 : index
    %c0_224 = arith.constant 0 : index
    %c0_225 = arith.constant 0 : index
    %446 = vector.load %arg7[%c1_223, %c0_224, %c0_225] : memref<2x1x128xf32, #tpu.memory_space<vmem>>, vector<1x1x128xf32>
    %447 = vector.shape_cast %446 : vector<1x1x128xf32> to vector<1x128xf32>
    %448 = vector.broadcast %447 : vector<1x128xf32> to vector<32x128xf32>
    %449 = arith.addf %445, %448 : vector<32x128xf32>
    %cst_226 = arith.constant 0.000000e+00 : f32
    %450 = vector.broadcast %cst_226 : f32 to vector<32x128xf32>
    %451 = arith.maximumf %449, %450 : vector<32x128xf32>
    %452 = arith.addf %451, %232 : vector<32x128xf32>
    %cst_227 = arith.constant 0.000000e+00 : f32
    %453 = vector.broadcast %cst_227 : f32 to vector<32x128xf32>
    %454 = arith.maximumf %452, %453 : vector<32x128xf32>
    %455 = vector.shape_cast %454 : vector<32x128xf32> to vector<2x16x128xf32>
    %cst_228 = arith.constant dense<0.000000e+00> : vector<2x128xf32>
    %456 = vector.multi_reduction <add>, %455, %cst_228 [1] : vector<2x16x128xf32> to vector<2x128xf32>
    %cst_229 = arith.constant 1.600000e+01 : f32
    %457 = vector.broadcast %cst_229 : f32 to vector<2x128xf32>
    %458 = arith.divf %456, %457 : vector<2x128xf32>
    %c0_230 = arith.constant 0 : index
    %c0_231 = arith.constant 0 : index
    %459 = vector.load %arg8[%c0_230, %c0_231] : memref<128x9xf32, #tpu.memory_space<vmem>>, vector<128x9xf32>
    %cst_232 = arith.constant dense<0.000000e+00> : vector<2x9xf32>
    %460 = tpu.matmul %458, %459, %cst_232 {dimension_numbers = #tpu.dot_dimension_numbers<[1], [0], [0], [1], [0, 0, 1, 1], [], []>} : vector<2x128xf32>, vector<128x9xf32>, vector<2x9xf32> -> vector<2x9xf32>
    %c0_233 = arith.constant 0 : index
    %c0_234 = arith.constant 0 : index
    %461 = vector.load %arg9[%c0_233, %c0_234] : memref<1x9xf32, #tpu.memory_space<vmem>>, vector<1x9xf32>
    %462 = vector.broadcast %461 : vector<1x9xf32> to vector<2x9xf32>
    %463 = arith.addf %460, %462 : vector<2x9xf32>
    %cst_235 = arith.constant dense<0xFF800000> : vector<2xf32>
    %464 = vector.multi_reduction <maximumf>, %463, %cst_235 [1] : vector<2x9xf32> to vector<2xf32>
    %465 = vector.shape_cast %464 : vector<2xf32> to vector<2x1xf32>
    %466 = vector.broadcast %465 : vector<2x1xf32> to vector<2x9xf32>
    %467 = arith.subf %463, %466 : vector<2x9xf32>
    %468 = math.exp %467 : vector<2x9xf32>
    %cst_236 = arith.constant dense<0.000000e+00> : vector<2xf32>
    %469 = vector.multi_reduction <add>, %468, %cst_236 [1] : vector<2x9xf32> to vector<2xf32>
    %470 = vector.shape_cast %469 : vector<2xf32> to vector<2x1xf32>
    %471 = math.log %470 : vector<2x1xf32>
    %472 = arith.addf %471, %465 : vector<2x1xf32>
    %473 = vector.broadcast %472 : vector<2x1xf32> to vector<2x9xf32>
    %474 = arith.subf %463, %473 : vector<2x9xf32>
    %c0_237 = arith.constant 0 : index
    %c0_238 = arith.constant 0 : index
    %475 = vector.load %arg10[%c0_237, %c0_238] : memref<2x9xf32, #tpu.memory_space<vmem>>, vector<2x9xf32>
    tpu.vector_store %arg10[%c0_237, %c0_238], %474 {strides = array<i32>} : memref<2x9xf32, #tpu.memory_space<vmem>>, vector<2x9xf32>,
    return
  }
}

</mosaic_0001>

<llo_original>
// kernel: tpu_custom_call.1
$region0: #{tpu_custom_call.1}
  #allocation0 [shape = 'u32[]', space=smem, size = 0x4, offset = 0x4, fixed_abs, tag = 'smem constant byte address 0x4 - core index']
  #allocation1 [shape = 'u32[72,128]{1,0:T(1,128)}', space=vmem, size = 0x9000, scoped, tag = 'internal scratch']
  %s0 = inlined_call_operand.vmem [shape: f32[2,16,4], index: 0, kind: input, shape index: {}]
  %s1 = inlined_call_operand.vmem [shape: bf16[4,128], index: 1, kind: input, shape index: {}]
  %s2 = inlined_call_operand.vmem [shape: f32[1,128], index: 2, kind: input, shape index: {}]
  %s3 = inlined_call_operand.vmem [shape: bf16[2,128,1], index: 3, kind: input, shape index: {}]
  %s4 = inlined_call_operand.vmem [shape: bf16[2,128,128], index: 4, kind: input, shape index: {}]
  %s5 = inlined_call_operand.vmem [shape: bf16[2,128,128], index: 5, kind: input, shape index: {}]
  %s6 = inlined_call_operand.vmem [shape: f32[2,1,128], index: 6, kind: input, shape index: {}]
  %s7 = inlined_call_operand.vmem [shape: f32[2,1,128], index: 7, kind: input, shape index: {}]
  %s8 = inlined_call_operand.vmem [shape: f32[128,9], index: 8, kind: input, shape index: {}]
  %s9 = inlined_call_operand.vmem [shape: f32[1,9], index: 9, kind: input, shape index: {}]
  %s10 = inlined_call_operand.hbm [shape: f32[2,9], index: 10, kind: output, shape index: {}]
  %s11 = sld [smem:[#allocation0]]
  $region50: #{tpu_custom_call.1} parent=0
    _
  %s13 = ssub.s32 1, %s11
  %s14 = scalar_select 0, %s13, %s11
  $region1: #{tpu_custom_call.1} parent=0
    #allocation2 [shape = 'u8[1024]{0}', space=vmem, size = 0x400, scoped, tag = 'output window, operand 0, single buffered']
    #allocation3 [shape = 's32[1]{0}', space=sflag, size = 0x4, scoped, tag = 'scoped memory for tpu_custom_call.1']
    %15 = vsyncpa [#allocation3], 0
    // Predicated region
    $region2: #{tpu_custom_call.1} parent=1 // pred_check
      _
    $region3: #{tpu_custom_call.1} parent=1 // pred_check_branch
      %17 = sbr.rel (0) target = $region5
    $region4: #{tpu_custom_call.1} parent=1 // pred_region
      _
    $region5: #{tpu_custom_call.1} parent=1 // pred_fallthru
      _
    // Predicated region
    $region6: #{tpu_custom_call.1} parent=1 // pred_check
      _
    $region7: #{tpu_custom_call.1} parent=1 // pred_check_branch
      %19 = sbr.rel (0) target = $region9
    $region8: #{tpu_custom_call.1} parent=1 // pred_region
      _
    $region9: #{tpu_custom_call.1} parent=1 // pred_fallthru
      _
    // Predicated region
    $region10: #{tpu_custom_call.1} parent=1 // pred_check
      _
    $region11: #{tpu_custom_call.1} parent=1 // pred_check_branch
      %21 = sbr.rel (0) target = $region13
    $region12: #{tpu_custom_call.1} parent=1 // pred_region
      _
    $region13: #{tpu_custom_call.1} parent=1 // pred_fallthru
      _
    // Predicated region
    $region14: #{tpu_custom_call.1} parent=1 // pred_check
      _
    $region15: #{tpu_custom_call.1} parent=1 // pred_check_branch
      %23 = sbr.rel (0) target = $region17
    $region16: #{tpu_custom_call.1} parent=1 // pred_region
      _
    $region17: #{tpu_custom_call.1} parent=1 // pred_fallthru
      _
    // Predicated region
    $region18: #{tpu_custom_call.1} parent=1 // pred_check
      _
    $region19: #{tpu_custom_call.1} parent=1 // pred_check_branch
      %25 = sbr.rel (0) target = $region21
    $region20: #{tpu_custom_call.1} parent=1 // pred_region
      _
    $region21: #{tpu_custom_call.1} parent=1 // pred_fallthru
      _
    // Predicated region
    $region22: #{tpu_custom_call.1} parent=1 // pred_check
      _
    $region23: #{tpu_custom_call.1} parent=1 // pred_check_branch
      %27 = sbr.rel (0) target = $region25
    $region24: #{tpu_custom_call.1} parent=1 // pred_region
      _
    $region25: #{tpu_custom_call.1} parent=1 // pred_fallthru
      _
    // Predicated region
    $region26: #{tpu_custom_call.1} parent=1 // pred_check
      _
    $region27: #{tpu_custom_call.1} parent=1 // pred_check_branch
      %29 = sbr.rel (0) target = $region29
    $region28: #{tpu_custom_call.1} parent=1 // pred_region
      _
    $region29: #{tpu_custom_call.1} parent=1 // pred_fallthru
      _
    // Predicated region
    $region30: #{tpu_custom_call.1} parent=1 // pred_check
      _
    $region31: #{tpu_custom_call.1} parent=1 // pred_check_branch
      %31 = sbr.rel (0) target = $region33
    $region32: #{tpu_custom_call.1} parent=1 // pred_region
      _
    $region33: #{tpu_custom_call.1} parent=1 // pred_fallthru
      _
    // Predicated region
    $region34: #{tpu_custom_call.1} parent=1 // pred_check
      _
    $region35: #{tpu_custom_call.1} parent=1 // pred_check_branch
      %33 = sbr.rel (0) target = $region37
    $region36: #{tpu_custom_call.1} parent=1 // pred_region
      _
    $region37: #{tpu_custom_call.1} parent=1 // pred_fallthru
      _
    // Predicated region
    $region38: #{tpu_custom_call.1} parent=1 // pred_check
      _
    $region39: #{tpu_custom_call.1} parent=1 // pred_check_branch
      %35 = sbr.rel (0) target = $region41
    $region40: #{tpu_custom_call.1} parent=1 // pred_region
      _
    $region41: #{tpu_custom_call.1} parent=1 // pred_fallthru
      _
    %v37 = vld [vmem:[%s0] sm:$0xff]
    %v38 = vld [vmem:[%s0 + $0x8] sm:$0xff]
    %v39 = vld [vmem:[%s0 + $0x10] sm:$0xff]
    %v40 = vld [vmem:[%s0 + $0x18] sm:$0xff]
    %v41 = vpack.c.bf16 %v38, %v37
    %v42 = vpack.c.bf16 %v40, %v39
    %v43 = vld [vmem:[%s1] sm:$0x3]
    %v44 = vld [vmem:[%s2] sm:$0x1]
    %v46 = vperm.slane %v44, 0
    %vm48 = vcmask 31744
    %v50 = vsel %vm48, %v41, 0
    %v53 = vsel %vm48, %v42, 0
    %vm55 = vcmask 1041408
    %v57 = vsel %vm55, %v43, 0
    %59 = vmatpush.bf16.msra.mxu0 0
    %60 = vmatpush.bf16.msra.mxu0 0
    %61 = vmatpush.bf16.msra.mxu0 0
    %62 = vmatpush.bf16.msra.mxu0 0
    %63 = vmatpush.bf16.msra.mxu0 0
    %64 = vmatpush.bf16.msra.mxu0 0
    %65 = vmatpush.bf16.msra.mxu0 0
    %66 = vmatpush.bf16.msra.mxu0 %v57
    %67 = vmatmul.bf16.gmra.mxu0 %v50
    %v68 = vpop.f32.mrf.mxu0
    %v69 = vadd.f32 %v46, %v68
    %v70 = vpop.f32.mrf.mxu0
    %v71 = vadd.f32 %v46, %v70
    %72 = vmatmul.bf16.gmra.mxu0 %v53
    %v73 = vpop.f32.mrf.mxu0
    %v74 = vadd.f32 %v46, %v73
    %v75 = vpop.f32.mrf.mxu0
    %v76 = vadd.f32 %v46, %v75
    %77 = vdwg.mxu0
    %v78 = vlaneseq
    %v79 = vshrl.u32 %v78, 7
    %v80 = vadd.s32 %v79, 8
    %v81 = vpack.c.bf16 %v71, %v69
    %v82 = vpack.c.bf16 %v76, %v74
    %v83 = vld [vmem:[%s3] sm:$0xf]
    %v84 = vld [vmem:[%s3 + $0x4] sm:$0xf]
    %v85 = vld [vmem:[%s3 + $0x8] sm:$0xf]
    %v86 = vld [vmem:[%s3 + $0xc] sm:$0xf]
    %v87 = vld [vmem:[%s3 + $0x10] sm:$0xf]
    %v88 = vld [vmem:[%s3 + $0x14] sm:$0xf]
    %v89 = vld [vmem:[%s3 + $0x18] sm:$0xf]
    %v90 = vld [vmem:[%s3 + $0x1c] sm:$0xf]
    %v91 = vld [vmem:[%s3 + $0x20] sm:$0xf]
    %v92 = vld [vmem:[%s3 + $0x24] sm:$0xf]
    %v93 = vld [vmem:[%s3 + $0x28] sm:$0xf]
    %v94 = vld [vmem:[%s3 + $0x2c] sm:$0xf]
    %v95 = vld [vmem:[%s3 + $0x30] sm:$0xf]
    %v96 = vld [vmem:[%s3 + $0x34] sm:$0xf]
    %v97 = vld [vmem:[%s3 + $0x38] sm:$0xf]
    %v98 = vld [vmem:[%s3 + $0x3c] sm:$0xf]
    %v115 = vunpack.c.l.b16 %v83
    %v116 = vunpack.c.l.b16 %v84
    %v117 = vunpack.c.l.b16 %v85
    %v118 = vunpack.c.l.b16 %v86
    %v119 = vunpack.c.l.b16 %v87
    %v120 = vunpack.c.l.b16 %v88
    %v121 = vunpack.c.l.b16 %v89
    %v122 = vunpack.c.l.b16 %v90
    %v123 = vunpack.c.l.b16 %v91
    %v124 = vunpack.c.l.b16 %v92
    %v125 = vunpack.c.l.b16 %v93
    %v126 = vunpack.c.l.b16 %v94
    %v127 = vunpack.c.l.b16 %v95
    %v128 = vunpack.c.l.b16 %v96
    %v129 = vunpack.c.l.b16 %v97
    %v130 = vunpack.c.l.b16 %v98
    %v131 = vpack.c.b16 %v116, %v115
    %v132 = vpack.c.b16 %v118, %v117
    %v133 = vpack.c.b16 %v120, %v119
    %v134 = vpack.c.b16 %v122, %v121
    %v135 = vpack.c.b16 %v124, %v123
    %v136 = vpack.c.b16 %v126, %v125
    %v137 = vpack.c.b16 %v128, %v127
    %v138 = vpack.c.b16 %v130, %v129
    %147 = vmatpush.bf16.msra.mxu0 %v138
    %148 = vmatpush.bf16.msra.mxu0 %v137
    %149 = vmatpush.bf16.msra.mxu0 %v136
    %150 = vmatpush.bf16.msra.mxu0 %v135
    %151 = vmatpush.bf16.msra.mxu0 %v134
    %152 = vmatpush.bf16.msra.mxu0 %v133
    %153 = vmatpush.bf16.msra.mxu0 %v132
    %154 = vmatpush.bf16.msra.mxu0 %v131
    %155 = vmatmul.bf16.gmra.mxu0 %v81
    %v156 = vpop.f32.mrf.mxu0
    %v157 = vadd.f32 0.0, %v156
    %v158 = vpop.f32.mrf.mxu0
    %v159 = vadd.f32 0.0, %v158
    %160 = vmatmul.bf16.gmra.mxu0 %v82
    %v161 = vpop.f32.mrf.mxu0
    %v162 = vadd.f32 0.0, %v161
    %v163 = vpop.f32.mrf.mxu0
    %v164 = vadd.f32 0.0, %v163
    %165 = vdwg.mxu0
    %vm166 = vcmp.eq.s32.totalorder %v79, 0
    %vm167 = vcmp.eq.s32.totalorder %v80, 0
    %v168 = vrot.slane %v69, 7
    %v169 = vrot.slane %v71, 7
    %v170 = vrot.slane %v74, 7
    %v171 = vrot.slane %v76, 7
    %vm172 = vcmp.lt.s32.totalorder %v79, 1
    %v173 = vsel %vm172, %v170, %v171
    %v174 = vsel %vm172, %v169, %v170
    %v175 = vsel %vm172, %v168, %v169
    %v176 = vsel %vm172, %v171, %v168
    %v177 = vsel %vm166, 1, 0
    %v178 = vsel %vm167, 1, 0
    %vm179 = vcmp.eq.s32.totalorder %v177, 1
    %vm180 = vcmp.eq.s32.totalorder %v178, 1
    %v181 = vsel %vm179, -inf, %v176
    %v182 = vsel %vm180, -inf, %v175
    %v183 = vsel %vm179, -inf, %v174
    %v184 = vsel %vm180, -inf, %v173
    %v185 = vmax.f32 %v69, %v181
    %v186 = vmax.f32 %v71, %v182
    %v187 = vmax.f32 %v74, %v183
    %v188 = vmax.f32 %v76, %v184
    %vm189 = vcmp.eq.s32.totalorder %v79, 15
    %vm190 = vcmp.eq.s32.totalorder %v80, 15
    %v191 = vrot.slane %v69, 1
    %v192 = vrot.slane %v71, 1
    %v193 = vrot.slane %v74, 1
    %v194 = vrot.slane %v76, 1
    %vm195 = vcmp.lt.s32.totalorder %v79, 7
    %v196 = vsel %vm195, %v193, %v194
    %v197 = vsel %vm195, %v192, %v193
    %v198 = vsel %vm195, %v191, %v192
    %v199 = vsel %vm195, %v194, %v191
    %v200 = vsel %vm189, 1, 0
    %v201 = vsel %vm190, 1, 0
    %vm202 = vcmp.eq.s32.totalorder %v200, 1
    %vm203 = vcmp.eq.s32.totalorder %v201, 1
    %v204 = vsel %vm202, -inf, %v198
    %v205 = vsel %vm203, -inf, %v197
    %v206 = vsel %vm202, -inf, %v196
    %v207 = vsel %vm203, -inf, %v199
    %v208 = vmax.f32 %v185, %v204
    %v209 = vmax.f32 %v186, %v205
    %v210 = vmax.f32 %v187, %v206
    %v211 = vmax.f32 %v188, %v207
    %vm212 = vcmp.lt.s32.totalorder %v79, 16
    %vm213 = vcmp.lt.s32.totalorder %v80, 16
    %v214 = vsel %vm212, 0.0, %v162
    %v215 = vsel %vm213, 0.0, %v164
    %v216 = vsel %vm212, 0.0, %v157
    %v217 = vsel %vm213, 0.0, %v159
    %v218 = vrot.slane %v157, 1
    %v219 = vrot.slane %v159, 1
    %v220 = vrot.slane %v162, 1
    %v221 = vrot.slane %v164, 1
    %v222 = vsel %vm195, %v220, %v221
    %v223 = vsel %vm195, %v219, %v220
    %v224 = vsel %vm195, %v218, %v219
    %v225 = vsel %vm195, %v221, %v218
    %vm226 = vcmp.lt.s32.totalorder %v79, 15
    %vm227 = vcmp.lt.s32.totalorder %v80, 15
    %v228 = vsel %vm226, 0.0, %v222
    %v229 = vsel %vm227, 0.0, %v225
    %v230 = vsel %vm226, 0.0, %v224
    %v231 = vsel %vm227, 0.0, %v223
    %v232 = vrot.slane %v157, 2
    %v233 = vrot.slane %v159, 2
    %v234 = vrot.slane %v162, 2
    %v235 = vrot.slane %v164, 2
    %vm236 = vcmp.lt.s32.totalorder %v79, 6
    %v237 = vsel %vm236, %v234, %v235
    %v238 = vsel %vm236, %v233, %v234
    %v239 = vsel %vm236, %v232, %v233
    %v240 = vsel %vm236, %v235, %v232
    %vm241 = vcmp.lt.s32.totalorder %v79, 14
    %vm242 = vcmp.lt.s32.totalorder %v80, 14
    %v243 = vsel %vm241, 0.0, %v237
    %v244 = vsel %vm242, 0.0, %v240
    %v245 = vsel %vm241, 0.0, %v239
    %v246 = vsel %vm242, 0.0, %v238
    %v247 = vrot.slane %v157, 3
    %v248 = vrot.slane %v159, 3
    %v249 = vrot.slane %v162, 3
    %v250 = vrot.slane %v164, 3
    %vm251 = vcmp.lt.s32.totalorder %v79, 5
    %v252 = vsel %vm251, %v249, %v250
    %v253 = vsel %vm251, %v248, %v249
    %v254 = vsel %vm251, %v247, %v248
    %v255 = vsel %vm251, %v250, %v247
    %vm256 = vcmp.lt.s32.totalorder %v79, 13
    %vm257 = vcmp.lt.s32.totalorder %v80, 13
    %v258 = vsel %vm256, 0.0, %v252
    %v259 = vsel %vm257, 0.0, %v255
    %v260 = vsel %vm256, 0.0, %v254
    %v261 = vsel %vm257, 0.0, %v253
    %v262 = vrot.slane %v157, 4
    %v263 = vrot.slane %v159, 4
    %v264 = vrot.slane %v162, 4
    %v265 = vrot.slane %v164, 4
    %vm266 = vcmp.lt.s32.totalorder %v79, 4
    %v267 = vsel %vm266, %v264, %v265
    %v268 = vsel %vm266, %v263, %v264
    %v269 = vsel %vm266, %v262, %v263
    %v270 = vsel %vm266, %v265, %v262
    %vm271 = vcmp.lt.s32.totalorder %v79, 12
    %vm272 = vcmp.lt.s32.totalorder %v80, 12
    %v273 = vsel %vm271, 0.0, %v267
    %v274 = vsel %vm272, 0.0, %v270
    %v275 = vsel %vm271, 0.0, %v269
    %v276 = vsel %vm272, 0.0, %v268
    %v277 = vrot.slane %v157, 5
    %v278 = vrot.slane %v159, 5
    %v279 = vrot.slane %v162, 5
    %v280 = vrot.slane %v164, 5
    %vm281 = vcmp.lt.s32.totalorder %v79, 3
    %v282 = vsel %vm281, %v279, %v280
    %v283 = vsel %vm281, %v278, %v279
    %v284 = vsel %vm281, %v277, %v278
    %v285 = vsel %vm281, %v280, %v277
    %vm286 = vcmp.lt.s32.totalorder %v79, 11
    %vm287 = vcmp.lt.s32.totalorder %v80, 11
    %v288 = vsel %vm286, 0.0, %v282
    %v289 = vsel %vm287, 0.0, %v285
    %v290 = vsel %vm286, 0.0, %v284
    %v291 = vsel %vm287, 0.0, %v283
    %v292 = vrot.slane %v157, 6
    %v293 = vrot.slane %v159, 6
    %v294 = vrot.slane %v162, 6
    %v295 = vrot.slane %v164, 6
    %vm296 = vcmp.lt.s32.totalorder %v79, 2
    %v297 = vsel %vm296, %v294, %v295
    %v298 = vsel %vm296, %v293, %v294
    %v299 = vsel %vm296, %v292, %v293
    %v300 = vsel %vm296, %v295, %v292
    %vm301 = vcmp.lt.s32.totalorder %v79, 10
    %vm302 = vcmp.lt.s32.totalorder %v80, 10
    %v303 = vsel %vm301, 0.0, %v297
    %v304 = vsel %vm302, 0.0, %v300
    %v305 = vsel %vm301, 0.0, %v299
    %v306 = vsel %vm302, 0.0, %v298
    %v307 = vrot.slane %v157, 7
    %v308 = vrot.slane %v159, 7
    %v309 = vrot.slane %v162, 7
    %v310 = vrot.slane %v164, 7
    %v311 = vsel %vm172, %v309, %v310
    %v312 = vsel %vm172, %v308, %v309
    %v313 = vsel %vm172, %v307, %v308
    %v314 = vsel %vm172, %v310, %v307
    %vm315 = vcmp.lt.s32.totalorder %v79, 9
    %vm316 = vcmp.lt.s32.totalorder %v80, 9
    %v317 = vsel %vm315, 0.0, %v311
    %v318 = vsel %vm316, 0.0, %v314
    %v319 = vsel %vm315, 0.0, %v313
    %v320 = vsel %vm316, 0.0, %v312
    %vm321 = vcmp.lt.s32.totalorder %v79, 8
    %vm322 = vcmp.lt.s32.totalorder %v80, 8
    %v323 = vsel %vm321, 0.0, %v164
    %v324 = vsel %vm322, 0.0, %v157
    %v325 = vsel %vm321, 0.0, %v159
    %v326 = vsel %vm322, 0.0, %v162
    %vm327 = vcmp.lt.s32.totalorder %v80, 7
    %v328 = vsel %vm195, 0.0, %v225
    %v329 = vsel %vm327, 0.0, %v224
    %v330 = vsel %vm195, 0.0, %v223
    %v331 = vsel %vm327, 0.0, %v222
    %vm332 = vcmp.lt.s32.totalorder %v80, 6
    %v333 = vsel %vm236, 0.0, %v240
    %v334 = vsel %vm332, 0.0, %v239
    %v335 = vsel %vm236, 0.0, %v238
    %v336 = vsel %vm332, 0.0, %v237
    %vm337 = vcmp.lt.s32.totalorder %v80, 5
    %v338 = vsel %vm251, 0.0, %v255
    %v339 = vsel %vm337, 0.0, %v254
    %v340 = vsel %vm251, 0.0, %v253
    %v341 = vsel %vm337, 0.0, %v252
    %vm342 = vcmp.lt.s32.totalorder %v80, 4
    %v343 = vsel %vm266, 0.0, %v270
    %v344 = vsel %vm342, 0.0, %v269
    %v345 = vsel %vm266, 0.0, %v268
    %v346 = vsel %vm342, 0.0, %v267
    %vm347 = vcmp.lt.s32.totalorder %v80, 3
    %v348 = vsel %vm281, 0.0, %v285
    %v349 = vsel %vm347, 0.0, %v284
    %v350 = vsel %vm281, 0.0, %v283
    %v351 = vsel %vm347, 0.0, %v282
    %vm352 = vcmp.lt.s32.totalorder %v80, 2
    %v353 = vsel %vm296, 0.0, %v300
    %v354 = vsel %vm352, 0.0, %v299
    %v355 = vsel %vm296, 0.0, %v298
    %v356 = vsel %vm352, 0.0, %v297
    %vm357 = vcmp.lt.s32.totalorder %v80, 1
    %v358 = vsel %vm172, 0.0, %v314
    %v359 = vsel %vm357, 0.0, %v313
    %v360 = vsel %vm172, 0.0, %v312
    %v361 = vsel %vm357, 0.0, %v311
    %vm362 = vcmp.ge.s32.totalorder %v79, 15
    %vm363 = vcmp.ge.s32.totalorder %v80, 15
    %v364 = vsel %vm362, 0.0, %v224
    %v365 = vsel %vm363, 0.0, %v223
    %v366 = vsel %vm362, 0.0, %v222
    %v367 = vsel %vm363, 0.0, %v225
    %vm368 = vcmp.ge.s32.totalorder %v79, 14
    %vm369 = vcmp.ge.s32.totalorder %v80, 14
    %v370 = vsel %vm368, 0.0, %v239
    %v371 = vsel %vm369, 0.0, %v238
    %v372 = vsel %vm368, 0.0, %v237
    %v373 = vsel %vm369, 0.0, %v240
    %vm374 = vcmp.ge.s32.totalorder %v79, 13
    %vm375 = vcmp.ge.s32.totalorder %v80, 13
    %v376 = vsel %vm374, 0.0, %v254
    %v377 = vsel %vm375, 0.0, %v253
    %v378 = vsel %vm374, 0.0, %v252
    %v379 = vsel %vm375, 0.0, %v255
    %vm380 = vcmp.ge.s32.totalorder %v79, 12
    %vm381 = vcmp.ge.s32.totalorder %v80, 12
    %v382 = vsel %vm380, 0.0, %v269
    %v383 = vsel %vm381, 0.0, %v268
    %v384 = vsel %vm380, 0.0, %v267
    %v385 = vsel %vm381, 0.0, %v270
    %vm386 = vcmp.ge.s32.totalorder %v79, 11
    %vm387 = vcmp.ge.s32.totalorder %v80, 11
    %v388 = vsel %vm386, 0.0, %v284
    %v389 = vsel %vm387, 0.0, %v283
    %v390 = vsel %vm386, 0.0, %v282
    %v391 = vsel %vm387, 0.0, %v285
    %vm392 = vcmp.ge.s32.totalorder %v79, 10
    %vm393 = vcmp.ge.s32.totalorder %v80, 10
    %v394 = vsel %vm392, 0.0, %v299
    %v395 = vsel %vm393, 0.0, %v298
    %v396 = vsel %vm392, 0.0, %v297
    %v397 = vsel %vm393, 0.0, %v300
    %vm398 = vcmp.ge.s32.totalorder %v79, 9
    %vm399 = vcmp.ge.s32.totalorder %v80, 9
    %v400 = vsel %vm398, 0.0, %v313
    %v401 = vsel %vm399, 0.0, %v312
    %v402 = vsel %vm398, 0.0, %v311
    %v403 = vsel %vm399, 0.0, %v314
    %vm404 = vcmp.ge.s32.totalorder %v79, 8
    %vm405 = vcmp.ge.s32.totalorder %v80, 8
    %v406 = vsel %vm404, 0.0, %v159
    %v407 = vsel %vm405, 0.0, %v162
    %v408 = vsel %vm404, 0.0, %v164
    %v409 = vsel %vm405, 0.0, %v157
    %vm410 = vcmp.ge.s32.totalorder %v79, 7
    %vm411 = vcmp.ge.s32.totalorder %v80, 7
    %v412 = vsel %vm410, 0.0, %v223
    %v413 = vsel %vm411, 0.0, %v222
    %v414 = vsel %vm410, 0.0, %v225
    %v415 = vsel %vm411, 0.0, %v224
    %vm416 = vcmp.ge.s32.totalorder %v79, 6
    %vm417 = vcmp.ge.s32.totalorder %v80, 6
    %v418 = vsel %vm416, 0.0, %v238
    %v419 = vsel %vm417, 0.0, %v237
    %v420 = vsel %vm416, 0.0, %v240
    %v421 = vsel %vm417, 0.0, %v239
    %vm422 = vcmp.ge.s32.totalorder %v79, 5
    %vm423 = vcmp.ge.s32.totalorder %v80, 5
    %v424 = vsel %vm422, 0.0, %v253
    %v425 = vsel %vm423, 0.0, %v252
    %v426 = vsel %vm422, 0.0, %v255
    %v427 = vsel %vm423, 0.0, %v254
    %vm428 = vcmp.ge.s32.totalorder %v79, 4
    %vm429 = vcmp.ge.s32.totalorder %v80, 4
    %v430 = vsel %vm428, 0.0, %v268
    %v431 = vsel %vm429, 0.0, %v267
    %v432 = vsel %vm428, 0.0, %v270
    %v433 = vsel %vm429, 0.0, %v269
    %vm434 = vcmp.ge.s32.totalorder %v79, 3
    %vm435 = vcmp.ge.s32.totalorder %v80, 3
    %v436 = vsel %vm434, 0.0, %v283
    %v437 = vsel %vm435, 0.0, %v282
    %v438 = vsel %vm434, 0.0, %v285
    %v439 = vsel %vm435, 0.0, %v284
    %vm440 = vcmp.ge.s32.totalorder %v79, 2
    %vm441 = vcmp.ge.s32.totalorder %v80, 2
    %v442 = vsel %vm440, 0.0, %v298
    %v443 = vsel %vm441, 0.0, %v297
    %v444 = vsel %vm440, 0.0, %v300
    %v445 = vsel %vm441, 0.0, %v299
    %vm446 = vcmp.ge.s32.totalorder %v79, 1
    %vm447 = vcmp.ge.s32.totalorder %v80, 1
    %v448 = vsel %vm446, 0.0, %v312
    %v449 = vsel %vm447, 0.0, %v311
    %v450 = vsel %vm446, 0.0, %v314
    %v451 = vsel %vm447, 0.0, %v313
    %vm452 = vcmp.ge.s32.totalorder %v79, 0
    %vm453 = vcmp.ge.s32.totalorder %v80, 0
    %v454 = vsel %vm452, 0.0, %v162
    %v455 = vsel %vm453, 0.0, %v164
    %v456 = vsel %vm452, 0.0, %v157
    %v457 = vsel %vm453, 0.0, %v159
    %462 = vrot.lane.b32.xlu0 %v228, 1
    %v463 = vpop.permute.xlu0 %462
    %464 = vrot.lane.b32.xlu0 %v229, 1
    %v465 = vpop.permute.xlu0 %464
    %466 = vrot.lane.b32.xlu0 %v230, 1
    %v467 = vpop.permute.xlu0 %466
    %468 = vrot.lane.b32.xlu0 %v231, 1
    %v469 = vpop.permute.xlu0 %468
    %478 = vrot.lane.b32.xlu0 %v243, 2
    %v479 = vpop.permute.xlu0 %478
    %480 = vrot.lane.b32.xlu0 %v244, 2
    %v481 = vpop.permute.xlu0 %480
    %482 = vrot.lane.b32.xlu0 %v245, 2
    %v483 = vpop.permute.xlu0 %482
    %484 = vrot.lane.b32.xlu0 %v246, 2
    %v485 = vpop.permute.xlu0 %484
    %494 = vrot.lane.b32.xlu0 %v258, 3
    %v495 = vpop.permute.xlu0 %494
    %496 = vrot.lane.b32.xlu0 %v259, 3
    %v497 = vpop.permute.xlu0 %496
    %498 = vrot.lane.b32.xlu0 %v260, 3
    %v499 = vpop.permute.xlu0 %498
    %500 = vrot.lane.b32.xlu0 %v261, 3
    %v501 = vpop.permute.xlu0 %500
    %510 = vrot.lane.b32.xlu0 %v273, 4
    %v511 = vpop.permute.xlu0 %510
    %512 = vrot.lane.b32.xlu0 %v274, 4
    %v513 = vpop.permute.xlu0 %512
    %514 = vrot.lane.b32.xlu0 %v275, 4
    %v515 = vpop.permute.xlu0 %514
    %516 = vrot.lane.b32.xlu0 %v276, 4
    %v517 = vpop.permute.xlu0 %516
    %526 = vrot.lane.b32.xlu0 %v288, 5
    %v527 = vpop.permute.xlu0 %526
    %528 = vrot.lane.b32.xlu0 %v289, 5
    %v529 = vpop.permute.xlu0 %528
    %530 = vrot.lane.b32.xlu0 %v290, 5
    %v531 = vpop.permute.xlu0 %530
    %532 = vrot.lane.b32.xlu0 %v291, 5
    %v533 = vpop.permute.xlu0 %532
    %542 = vrot.lane.b32.xlu0 %v303, 6
    %v543 = vpop.permute.xlu0 %542
    %544 = vrot.lane.b32.xlu0 %v304, 6
    %v545 = vpop.permute.xlu0 %544
    %546 = vrot.lane.b32.xlu0 %v305, 6
    %v547 = vpop.permute.xlu0 %546
    %548 = vrot.lane.b32.xlu0 %v306, 6
    %v549 = vpop.permute.xlu0 %548
    %558 = vrot.lane.b32.xlu0 %v317, 7
    %v559 = vpop.permute.xlu0 %558
    %560 = vrot.lane.b32.xlu0 %v318, 7
    %v561 = vpop.permute.xlu0 %560
    %562 = vrot.lane.b32.xlu0 %v319, 7
    %v563 = vpop.permute.xlu0 %562
    %564 = vrot.lane.b32.xlu0 %v320, 7
    %v565 = vpop.permute.xlu0 %564
    %574 = vrot.lane.b32.xlu0 %v323, 8
    %v575 = vpop.permute.xlu0 %574
    %576 = vrot.lane.b32.xlu0 %v324, 8
    %v577 = vpop.permute.xlu0 %576
    %578 = vrot.lane.b32.xlu0 %v325, 8
    %v579 = vpop.permute.xlu0 %578
    %580 = vrot.lane.b32.xlu0 %v326, 8
    %v581 = vpop.permute.xlu0 %580
    %590 = vrot.lane.b32.xlu0 %v328, 9
    %v591 = vpop.permute.xlu0 %590
    %592 = vrot.lane.b32.xlu0 %v329, 9
    %v593 = vpop.permute.xlu0 %592
    %594 = vrot.lane.b32.xlu0 %v330, 9
    %v595 = vpop.permute.xlu0 %594
    %596 = vrot.lane.b32.xlu0 %v331, 9
    %v597 = vpop.permute.xlu0 %596
    %606 = vrot.lane.b32.xlu0 %v333, 10
    %v607 = vpop.permute.xlu0 %606
    %608 = vrot.lane.b32.xlu0 %v334, 10
    %v609 = vpop.permute.xlu0 %608
    %610 = vrot.lane.b32.xlu0 %v335, 10
    %v611 = vpop.permute.xlu0 %610
    %612 = vrot.lane.b32.xlu0 %v336, 10
    %v613 = vpop.permute.xlu0 %612
    %622 = vrot.lane.b32.xlu0 %v338, 11
    %v623 = vpop.permute.xlu0 %622
    %624 = vrot.lane.b32.xlu0 %v339, 11
    %v625 = vpop.permute.xlu0 %624
    %626 = vrot.lane.b32.xlu0 %v340, 11
    %v627 = vpop.permute.xlu0 %626
    %628 = vrot.lane.b32.xlu0 %v341, 11
    %v629 = vpop.permute.xlu0 %628
    %638 = vrot.lane.b32.xlu0 %v343, 12
    %v639 = vpop.permute.xlu0 %638
    %640 = vrot.lane.b32.xlu0 %v344, 12
    %v641 = vpop.permute.xlu0 %640
    %642 = vrot.lane.b32.xlu0 %v345, 12
    %v643 = vpop.permute.xlu0 %642
    %644 = vrot.lane.b32.xlu0 %v346, 12
    %v645 = vpop.permute.xlu0 %644
    %654 = vrot.lane.b32.xlu0 %v348, 13
    %v655 = vpop.permute.xlu0 %654
    %656 = vrot.lane.b32.xlu0 %v349, 13
    %v657 = vpop.permute.xlu0 %656
    %658 = vrot.lane.b32.xlu0 %v350, 13
    %v659 = vpop.permute.xlu0 %658
    %660 = vrot.lane.b32.xlu0 %v351, 13
    %v661 = vpop.permute.xlu0 %660
    %670 = vrot.lane.b32.xlu0 %v353, 14
    %v671 = vpop.permute.xlu0 %670
    %672 = vrot.lane.b32.xlu0 %v354, 14
    %v673 = vpop.permute.xlu0 %672
    %674 = vrot.lane.b32.xlu0 %v355, 14
    %v675 = vpop.permute.xlu0 %674
    %676 = vrot.lane.b32.xlu0 %v356, 14
    %v677 = vpop.permute.xlu0 %676
    %686 = vrot.lane.b32.xlu0 %v358, 15
    %v687 = vpop.permute.xlu0 %686
    %688 = vrot.lane.b32.xlu0 %v359, 15
    %v689 = vpop.permute.xlu0 %688
    %690 = vrot.lane.b32.xlu0 %v360, 15
    %v691 = vpop.permute.xlu0 %690
    %692 = vrot.lane.b32.xlu0 %v361, 15
    %v693 = vpop.permute.xlu0 %692
    %vm698 = vcmask 7168
    %v699 = vsel %vm698, %v214, %v463
    %v700 = vsel %vm698, %v215, %v465
    %v701 = vsel %vm698, %v216, %v467
    %v702 = vsel %vm698, %v217, %v469
    %vm703 = vcmask 15360
    %v704 = vsel %vm703, %v699, %v479
    %v705 = vsel %vm703, %v700, %v481
    %v706 = vsel %vm703, %v701, %v483
    %v707 = vsel %vm703, %v702, %v485
    %vm708 = vcmask 23552
    %v709 = vsel %vm708, %v704, %v495
    %v710 = vsel %vm708, %v705, %v497
    %v711 = vsel %vm708, %v706, %v499
    %v712 = vsel %vm708, %v707, %v501
    %v713 = vsel %vm48, %v709, %v511
    %v714 = vsel %vm48, %v710, %v513
    %v715 = vsel %vm48, %v711, %v515
    %v716 = vsel %vm48, %v712, %v517
    %vm717 = vcmask 39936
    %v718 = vsel %vm717, %v713, %v527
    %v719 = vsel %vm717, %v714, %v529
    %v720 = vsel %vm717, %v715, %v531
    %v721 = vsel %vm717, %v716, %v533
    %vm722 = vcmask 48128
    %v723 = vsel %vm722, %v718, %v543
    %v724 = vsel %vm722, %v719, %v545
    %v725 = vsel %vm722, %v720, %v547
    %v726 = vsel %vm722, %v721, %v549
    %vm727 = vcmask 56320
    %v728 = vsel %vm727, %v723, %v559
    %v729 = vsel %vm727, %v724, %v561
    %v730 = vsel %vm727, %v725, %v563
    %v731 = vsel %vm727, %v726, %v565
    %vm732 = vcmask 64512
    %v733 = vsel %vm732, %v728, %v575
    %v734 = vsel %vm732, %v729, %v577
    %v735 = vsel %vm732, %v730, %v579
    %v736 = vsel %vm732, %v731, %v581
    %vm737 = vcmask 72704
    %v738 = vsel %vm737, %v733, %v591
    %v739 = vsel %vm737, %v734, %v593
    %v740 = vsel %vm737, %v735, %v595
    %v741 = vsel %vm737, %v736, %v597
    %vm742 = vcmask 80896
    %v743 = vsel %vm742, %v738, %v607
    %v744 = vsel %vm742, %v739, %v609
    %v745 = vsel %vm742, %v740, %v611
    %v746 = vsel %vm742, %v741, %v613
    %vm747 = vcmask 89088
    %v748 = vsel %vm747, %v743, %v623
    %v749 = vsel %vm747, %v744, %v625
    %v750 = vsel %vm747, %v745, %v627
    %v751 = vsel %vm747, %v746, %v629
    %vm752 = vcmask 97280
    %v753 = vsel %vm752, %v748, %v639
    %v754 = vsel %vm752, %v749, %v641
    %v755 = vsel %vm752, %v750, %v643
    %v756 = vsel %vm752, %v751, %v645
    %vm757 = vcmask 105472
    %v758 = vsel %vm757, %v753, %v655
    %v759 = vsel %vm757, %v754, %v657
    %v760 = vsel %vm757, %v755, %v659
    %v761 = vsel %vm757, %v756, %v661
    %vm762 = vcmask 113664
    %v763 = vsel %vm762, %v758, %v671
    %v764 = vsel %vm762, %v759, %v673
    %v765 = vsel %vm762, %v760, %v675
    %v766 = vsel %vm762, %v761, %v677
    %vm767 = vcmask 121856
    %v768 = vsel %vm767, %v763, %v687
    %v769 = vsel %vm767, %v764, %v689
    %v770 = vsel %vm767, %v765, %v691
    %v771 = vsel %vm767, %v766, %v693
    %776 = vrot.lane.b32.xlu0 %v364, 1
    %v777 = vpop.permute.xlu0 %776
    %778 = vrot.lane.b32.xlu0 %v365, 1
    %v779 = vpop.permute.xlu0 %778
    %780 = vrot.lane.b32.xlu0 %v366, 1
    %v781 = vpop.permute.xlu0 %780
    %782 = vrot.lane.b32.xlu0 %v367, 1
    %v783 = vpop.permute.xlu0 %782
    %792 = vrot.lane.b32.xlu0 %v370, 2
    %v793 = vpop.permute.xlu0 %792
    %794 = vrot.lane.b32.xlu0 %v371, 2
    %v795 = vpop.permute.xlu0 %794
    %796 = vrot.lane.b32.xlu0 %v372, 2
    %v797 = vpop.permute.xlu0 %796
    %798 = vrot.lane.b32.xlu0 %v373, 2
    %v799 = vpop.permute.xlu0 %798
    %808 = vrot.lane.b32.xlu0 %v376, 3
    %v809 = vpop.permute.xlu0 %808
    %810 = vrot.lane.b32.xlu0 %v377, 3
    %v811 = vpop.permute.xlu0 %810
    %812 = vrot.lane.b32.xlu0 %v378, 3
    %v813 = vpop.permute.xlu0 %812
    %814 = vrot.lane.b32.xlu0 %v379, 3
    %v815 = vpop.permute.xlu0 %814
    %824 = vrot.lane.b32.xlu0 %v382, 4
    %v825 = vpop.permute.xlu0 %824
    %826 = vrot.lane.b32.xlu0 %v383, 4
    %v827 = vpop.permute.xlu0 %826
    %828 = vrot.lane.b32.xlu0 %v384, 4
    %v829 = vpop.permute.xlu0 %828
    %830 = vrot.lane.b32.xlu0 %v385, 4
    %v831 = vpop.permute.xlu0 %830
    %840 = vrot.lane.b32.xlu0 %v388, 5
    %v841 = vpop.permute.xlu0 %840
    %842 = vrot.lane.b32.xlu0 %v389, 5
    %v843 = vpop.permute.xlu0 %842
    %844 = vrot.lane.b32.xlu0 %v390, 5
    %v845 = vpop.permute.xlu0 %844
    %846 = vrot.lane.b32.xlu0 %v391, 5
    %v847 = vpop.permute.xlu0 %846
    %856 = vrot.lane.b32.xlu0 %v394, 6
    %v857 = vpop.permute.xlu0 %856
    %858 = vrot.lane.b32.xlu0 %v395, 6
    %v859 = vpop.permute.xlu0 %858
    %860 = vrot.lane.b32.xlu0 %v396, 6
    %v861 = vpop.permute.xlu0 %860
    %862 = vrot.lane.b32.xlu0 %v397, 6
    %v863 = vpop.permute.xlu0 %862
    %872 = vrot.lane.b32.xlu0 %v400, 7
    %v873 = vpop.permute.xlu0 %872
    %874 = vrot.lane.b32.xlu0 %v401, 7
    %v875 = vpop.permute.xlu0 %874
    %876 = vrot.lane.b32.xlu0 %v402, 7
    %v877 = vpop.permute.xlu0 %876
    %878 = vrot.lane.b32.xlu0 %v403, 7
    %v879 = vpop.permute.xlu0 %878
    %888 = vrot.lane.b32.xlu0 %v406, 8
    %v889 = vpop.permute.xlu0 %888
    %890 = vrot.lane.b32.xlu0 %v407, 8
    %v891 = vpop.permute.xlu0 %890
    %892 = vrot.lane.b32.xlu0 %v408, 8
    %v893 = vpop.permute.xlu0 %892
    %894 = vrot.lane.b32.xlu0 %v409, 8
    %v895 = vpop.permute.xlu0 %894
    %904 = vrot.lane.b32.xlu0 %v412, 9
    %v905 = vpop.permute.xlu0 %904
    %906 = vrot.lane.b32.xlu0 %v413, 9
    %v907 = vpop.permute.xlu0 %906
    %908 = vrot.lane.b32.xlu0 %v414, 9
    %v909 = vpop.permute.xlu0 %908
    %910 = vrot.lane.b32.xlu0 %v415, 9
    %v911 = vpop.permute.xlu0 %910
    %920 = vrot.lane.b32.xlu0 %v418, 10
    %v921 = vpop.permute.xlu0 %920
    %922 = vrot.lane.b32.xlu0 %v419, 10
    %v923 = vpop.permute.xlu0 %922
    %924 = vrot.lane.b32.xlu0 %v420, 10
    %v925 = vpop.permute.xlu0 %924
    %926 = vrot.lane.b32.xlu0 %v421, 10
    %v927 = vpop.permute.xlu0 %926
    %936 = vrot.lane.b32.xlu0 %v424, 11
    %v937 = vpop.permute.xlu0 %936
    %938 = vrot.lane.b32.xlu0 %v425, 11
    %v939 = vpop.permute.xlu0 %938
    %940 = vrot.lane.b32.xlu0 %v426, 11
    %v941 = vpop.permute.xlu0 %940
    %942 = vrot.lane.b32.xlu0 %v427, 11
    %v943 = vpop.permute.xlu0 %942
    %952 = vrot.lane.b32.xlu0 %v430, 12
    %v953 = vpop.permute.xlu0 %952
    %954 = vrot.lane.b32.xlu0 %v431, 12
    %v955 = vpop.permute.xlu0 %954
    %956 = vrot.lane.b32.xlu0 %v432, 12
    %v957 = vpop.permute.xlu0 %956
    %958 = vrot.lane.b32.xlu0 %v433, 12
    %v959 = vpop.permute.xlu0 %958
    %968 = vrot.lane.b32.xlu0 %v436, 13
    %v969 = vpop.permute.xlu0 %968
    %970 = vrot.lane.b32.xlu0 %v437, 13
    %v971 = vpop.permute.xlu0 %970
    %972 = vrot.lane.b32.xlu0 %v438, 13
    %v973 = vpop.permute.xlu0 %972
    %974 = vrot.lane.b32.xlu0 %v439, 13
    %v975 = vpop.permute.xlu0 %974
    %984 = vrot.lane.b32.xlu0 %v442, 14
    %v985 = vpop.permute.xlu0 %984
    %986 = vrot.lane.b32.xlu0 %v443, 14
    %v987 = vpop.permute.xlu0 %986
    %988 = vrot.lane.b32.xlu0 %v444, 14
    %v989 = vpop.permute.xlu0 %988
    %990 = vrot.lane.b32.xlu0 %v445, 14
    %v991 = vpop.permute.xlu0 %990
    %1000 = vrot.lane.b32.xlu0 %v448, 15
    %v1001 = vpop.permute.xlu0 %1000
    %1002 = vrot.lane.b32.xlu0 %v449, 15
    %v1003 = vpop.permute.xlu0 %1002
    %1004 = vrot.lane.b32.xlu0 %v450, 15
    %v1005 = vpop.permute.xlu0 %1004
    %1006 = vrot.lane.b32.xlu0 %v451, 15
    %v1007 = vpop.permute.xlu0 %1006
    %v1012 = vsel %vm698, %v157, %v777
    %v1013 = vsel %vm698, %v159, %v779
    %v1014 = vsel %vm698, %v162, %v781
    %v1015 = vsel %vm698, %v164, %v783
    %v1016 = vsel %vm703, %v1012, %v793
    %v1017 = vsel %vm703, %v1013, %v795
    %v1018 = vsel %vm703, %v1014, %v797
    %v1019 = vsel %vm703, %v1015, %v799
    %v1020 = vsel %vm708, %v1016, %v809
    %v1021 = vsel %vm708, %v1017, %v811
    %v1022 = vsel %vm708, %v1018, %v813
    %v1023 = vsel %vm708, %v1019, %v815
    %v1024 = vsel %vm48, %v1020, %v825
    %v1025 = vsel %vm48, %v1021, %v827
    %v1026 = vsel %vm48, %v1022, %v829
    %v1027 = vsel %vm48, %v1023, %v831
    %v1028 = vsel %vm717, %v1024, %v841
    %v1029 = vsel %vm717, %v1025, %v843
    %v1030 = vsel %vm717, %v1026, %v845
    %v1031 = vsel %vm717, %v1027, %v847
    %v1032 = vsel %vm722, %v1028, %v857
    %v1033 = vsel %vm722, %v1029, %v859
    %v1034 = vsel %vm722, %v1030, %v861
    %v1035 = vsel %vm722, %v1031, %v863
    %v1036 = vsel %vm727, %v1032, %v873
    %v1037 = vsel %vm727, %v1033, %v875
    %v1038 = vsel %vm727, %v1034, %v877
    %v1039 = vsel %vm727, %v1035, %v879
    %v1040 = vsel %vm732, %v1036, %v889
    %v1041 = vsel %vm732, %v1037, %v891
    %v1042 = vsel %vm732, %v1038, %v893
    %v1043 = vsel %vm732, %v1039, %v895
    %v1044 = vsel %vm737, %v1040, %v905
    %v1045 = vsel %vm737, %v1041, %v907
    %v1046 = vsel %vm737, %v1042, %v909
    %v1047 = vsel %vm737, %v1043, %v911
    %v1048 = vsel %vm742, %v1044, %v921
    %v1049 = vsel %vm742, %v1045, %v923
    %v1050 = vsel %vm742, %v1046, %v925
    %v1051 = vsel %vm742, %v1047, %v927
    %v1052 = vsel %vm747, %v1048, %v937
    %v1053 = vsel %vm747, %v1049, %v939
    %v1054 = vsel %vm747, %v1050, %v941
    %v1055 = vsel %vm747, %v1051, %v943
    %v1056 = vsel %vm752, %v1052, %v953
    %v1057 = vsel %vm752, %v1053, %v955
    %v1058 = vsel %vm752, %v1054, %v957
    %v1059 = vsel %vm752, %v1055, %v959
    %v1060 = vsel %vm757, %v1056, %v969
    %v1061 = vsel %vm757, %v1057, %v971
    %v1062 = vsel %vm757, %v1058, %v973
    %v1063 = vsel %vm757, %v1059, %v975
    %v1064 = vsel %vm762, %v1060, %v985
    %v1065 = vsel %vm762, %v1061, %v987
    %v1066 = vsel %vm762, %v1062, %v989
    %v1067 = vsel %vm762, %v1063, %v991
    %v1068 = vsel %vm767, %v1064, %v1001
    %v1069 = vsel %vm767, %v1065, %v1003
    %v1070 = vsel %vm767, %v1066, %v1005
    %v1071 = vsel %vm767, %v1067, %v1007
    %v1072 = vsel %vm698, %v454, 0.0
    %v1073 = vsel %vm698, %v455, 0.0
    %v1074 = vsel %vm698, %v456, 0.0
    %v1075 = vsel %vm698, %v457, 0.0
    %1080 = vrot.lane.b32.xlu0 %v1068, 16
    %v1081 = vpop.permute.xlu0 %1080
    %1082 = vrot.lane.b32.xlu0 %v1069, 16
    %v1083 = vpop.permute.xlu0 %1082
    %1084 = vrot.lane.b32.xlu0 %v1070, 16
    %v1085 = vpop.permute.xlu0 %1084
    %1086 = vrot.lane.b32.xlu0 %v1071, 16
    %v1087 = vpop.permute.xlu0 %1086
    %1096 = vrot.lane.b32.xlu0 %v1072, 32
    %v1097 = vpop.permute.xlu0 %1096
    %1098 = vrot.lane.b32.xlu0 %v1073, 32
    %v1099 = vpop.permute.xlu0 %1098
    %1100 = vrot.lane.b32.xlu0 %v1074, 32
    %v1101 = vpop.permute.xlu0 %1100
    %1102 = vrot.lane.b32.xlu0 %v1075, 32
    %v1103 = vpop.permute.xlu0 %1102
    %vm1108 = vcmask 130048
    %v1109 = vsel %vm1108, %v768, %v1081
    %v1110 = vsel %vm1108, %v769, %v1083
    %v1111 = vsel %vm1108, %v770, %v1085
    %v1112 = vsel %vm1108, %v771, %v1087
    %vm1113 = vcmask 261120
    %v1114 = vsel %vm1113, %v1109, %v1097
    %v1115 = vsel %vm1113, %v1110, %v1099
    %v1116 = vsel %vm1113, %v1111, %v1101
    %v1117 = vsel %vm1113, %v1112, %v1103
    %v1118 = vpack.c.bf16 %v1115, %v1114
    %v1119 = vpack.c.bf16 %v1117, %v1116
    %v1120 = vld [vmem:[%s4] sm:$0xf]
    %v1121 = vld [vmem:[%s4 + $0x4] sm:$0xf]
    %v1122 = vld [vmem:[%s4 + $0x8] sm:$0xf]
    %v1123 = vld [vmem:[%s4 + $0xc] sm:$0xf]
    %v1124 = vld [vmem:[%s4 + $0x10] sm:$0xf]
    %v1125 = vld [vmem:[%s4 + $0x14] sm:$0xf]
    %v1126 = vld [vmem:[%s4 + $0x18] sm:$0xf]
    %v1127 = vld [vmem:[%s4 + $0x1c] sm:$0xf]
    %v1128 = vld [vmem:[%s4 + $0x20] sm:$0xf]
    %v1129 = vld [vmem:[%s4 + $0x24] sm:$0xf]
    %v1130 = vld [vmem:[%s4 + $0x28] sm:$0xf]
    %v1131 = vld [vmem:[%s4 + $0x2c] sm:$0xf]
    %v1132 = vld [vmem:[%s4 + $0x30] sm:$0xf]
    %v1133 = vld [vmem:[%s4 + $0x34] sm:$0xf]
    %v1134 = vld [vmem:[%s4 + $0x38] sm:$0xf]
    %v1135 = vld [vmem:[%s4 + $0x3c] sm:$0xf]
    %v1136 = vpack.c.bf16 %v209, %v208
    %v1137 = vpack.c.bf16 %v211, %v210
    %v1138 = vld [vmem:[%s5] sm:$0xf]
    %v1139 = vld [vmem:[%s5 + $0x4] sm:$0xf]
    %v1140 = vld [vmem:[%s5 + $0x8] sm:$0xf]
    %v1141 = vld [vmem:[%s5 + $0xc] sm:$0xf]
    %v1142 = vld [vmem:[%s5 + $0x10] sm:$0xf]
    %v1143 = vld [vmem:[%s5 + $0x14] sm:$0xf]
    %v1144 = vld [vmem:[%s5 + $0x18] sm:$0xf]
    %v1145 = vld [vmem:[%s5 + $0x1c] sm:$0xf]
    %v1146 = vld [vmem:[%s5 + $0x20] sm:$0xf]
    %v1147 = vld [vmem:[%s5 + $0x24] sm:$0xf]
    %v1148 = vld [vmem:[%s5 + $0x28] sm:$0xf]
    %v1149 = vld [vmem:[%s5 + $0x2c] sm:$0xf]
    %v1150 = vld [vmem:[%s5 + $0x30] sm:$0xf]
    %v1151 = vld [vmem:[%s5 + $0x34] sm:$0xf]
    %v1152 = vld [vmem:[%s5 + $0x38] sm:$0xf]
    %v1153 = vld [vmem:[%s5 + $0x3c] sm:$0xf]
    %v1170 = vunpack.c.l.b16 %v1138
    %v1171 = vunpack.c.l.b16 %v1139
    %v1172 = vunpack.c.l.b16 %v1140
    %v1173 = vunpack.c.l.b16 %v1141
    %v1174 = vunpack.c.l.b16 %v1142
    %v1175 = vunpack.c.l.b16 %v1143
    %v1176 = vunpack.c.l.b16 %v1144
    %v1177 = vunpack.c.l.b16 %v1145
    %v1178 = vunpack.c.l.b16 %v1146
    %v1179 = vunpack.c.l.b16 %v1147
    %v1180 = vunpack.c.l.b16 %v1148
    %v1181 = vunpack.c.l.b16 %v1149
    %v1182 = vunpack.c.l.b16 %v1150
    %v1183 = vunpack.c.l.b16 %v1151
    %v1184 = vunpack.c.l.b16 %v1152
    %v1185 = vunpack.c.l.b16 %v1153
    %v1186 = vpack.c.b16 %v1171, %v1170
    %v1187 = vpack.c.b16 %v1173, %v1172
    %v1188 = vpack.c.b16 %v1175, %v1174
    %v1189 = vpack.c.b16 %v1177, %v1176
    %v1190 = vpack.c.b16 %v1179, %v1178
    %v1191 = vpack.c.b16 %v1181, %v1180
    %v1192 = vpack.c.b16 %v1183, %v1182
    %v1193 = vpack.c.b16 %v1185, %v1184
    %1202 = vmatpush.bf16.msra.mxu0 %v1193
    %1203 = vmatpush.bf16.msra.mxu0 %v1192
    %1204 = vmatpush.bf16.msra.mxu0 %v1191
    %1205 = vmatpush.bf16.msra.mxu0 %v1190
    %1206 = vmatpush.bf16.msra.mxu0 %v1189
    %1207 = vmatpush.bf16.msra.mxu0 %v1188
    %1208 = vmatpush.bf16.msra.mxu0 %v1187
    %1209 = vmatpush.bf16.msra.mxu0 %v1186
    %1210 = vmatmul.bf16.gmra.mxu0 %v1136
    %v1211 = vpop.f32.mrf.mxu0
    %v1212 = vadd.f32 0.0, %v1211
    %v1213 = vpop.f32.mrf.mxu0
    %v1214 = vadd.f32 0.0, %v1213
    %1215 = vmatmul.bf16.gmra.mxu0 %v1137
    %v1216 = vpop.f32.mrf.mxu0
    %v1217 = vadd.f32 0.0, %v1216
    %v1218 = vpop.f32.mrf.mxu0
    %v1219 = vadd.f32 0.0, %v1218
    %1220 = vdwg.mxu0
    %v1237 = vunpack.c.l.b16 %v1120
    %v1238 = vunpack.c.l.b16 %v1121
    %v1239 = vunpack.c.l.b16 %v1122
    %v1240 = vunpack.c.l.b16 %v1123
    %v1241 = vunpack.c.l.b16 %v1124
    %v1242 = vunpack.c.l.b16 %v1125
    %v1243 = vunpack.c.l.b16 %v1126
    %v1244 = vunpack.c.l.b16 %v1127
    %v1245 = vunpack.c.l.b16 %v1128
    %v1246 = vunpack.c.l.b16 %v1129
    %v1247 = vunpack.c.l.b16 %v1130
    %v1248 = vunpack.c.l.b16 %v1131
    %v1249 = vunpack.c.l.b16 %v1132
    %v1250 = vunpack.c.l.b16 %v1133
    %v1251 = vunpack.c.l.b16 %v1134
    %v1252 = vunpack.c.l.b16 %v1135
    %v1253 = vpack.c.b16 %v1238, %v1237
    %v1254 = vpack.c.b16 %v1240, %v1239
    %v1255 = vpack.c.b16 %v1242, %v1241
    %v1256 = vpack.c.b16 %v1244, %v1243
    %v1257 = vpack.c.b16 %v1246, %v1245
    %v1258 = vpack.c.b16 %v1248, %v1247
    %v1259 = vpack.c.b16 %v1250, %v1249
    %v1260 = vpack.c.b16 %v1252, %v1251
    %1269 = vmatpush.bf16.msra.mxu0 %v1260
    %1270 = vmatpush.bf16.msra.mxu0 %v1259
    %1271 = vmatpush.bf16.msra.mxu0 %v1258
    %1272 = vmatpush.bf16.msra.mxu0 %v1257
    %1273 = vmatpush.bf16.msra.mxu0 %v1256
    %1274 = vmatpush.bf16.msra.mxu0 %v1255
    %1275 = vmatpush.bf16.msra.mxu0 %v1254
    %1276 = vmatpush.bf16.msra.mxu0 %v1253
    %1277 = vmatmul.bf16.gmra.mxu0 %v1118
    %v1278 = vpop.f32.mrf.mxu0
    %v1279 = vadd.f32 %v1212, %v1278
    %v1280 = vpop.f32.mrf.mxu0
    %v1281 = vadd.f32 %v1214, %v1280
    %1282 = vmatmul.bf16.gmra.mxu0 %v1119
    %v1283 = vpop.f32.mrf.mxu0
    %v1284 = vadd.f32 %v1217, %v1283
    %v1285 = vpop.f32.mrf.mxu0
    %v1286 = vadd.f32 %v1219, %v1285
    %1287 = vdwg.mxu0
    %v1288 = vadd.f32 %v1279, %v1281
    %v1289 = vadd.f32 %v1288, %v1284
    %v1290 = vadd.f32 %v1289, %v1286
    %v1291 = vrot.slane %v1290, 4
    %v1292 = vadd.f32 %v1290, %v1291
    %v1293 = vrot.slane %v1292, 2
    %v1294 = vadd.f32 %v1292, %v1293
    %v1295 = vrot.slane %v1294, 1
    %v1296 = vadd.f32 %v1294, %v1295
    %v1297 = vmul.f32 %v1296, 0.03125
    %v1298 = vsub.f32 %v1279, %v1297
    %v1299 = vsub.f32 %v1281, %v1297
    %v1300 = vsub.f32 %v1284, %v1297
    %v1301 = vsub.f32 %v1286, %v1297
    %v1302 = vmul.f32 %v1298, %v1298
    %v1303 = vmul.f32 %v1299, %v1299
    %v1304 = vmul.f32 %v1300, %v1300
    %v1305 = vmul.f32 %v1301, %v1301
    %v1306 = vadd.f32 %v1302, %v1303
    %v1307 = vadd.f32 %v1306, %v1304
    %v1308 = vadd.f32 %v1307, %v1305
    %v1309 = vrot.slane %v1308, 4
    %v1310 = vadd.f32 %v1308, %v1309
    %v1311 = vrot.slane %v1310, 2
    %v1312 = vadd.f32 %v1310, %v1311
    %v1313 = vrot.slane %v1312, 1
    %v1314 = vadd.f32 %v1312, %v1313
    %v1315 = vmul.f32 %v1314, 0.03125
    %v1316 = vadd.f32 %v1315, 1e-05
    %v1317 = vrsqrt.pop %v1316
    %v1318 = vmul.f32 %v1317, %v1316
    %v1319 = vmul.f32 %v1318, %v1317
    %v1320 = vmul.f32 0.5, %v1319
    %v1321 = vsub.f32 1.5, %v1320
    %v1322 = vmul.f32 %v1317, %v1321
    %vm1323 = vweird.f32 %v1316
    %vm1324 = vweird.f32 %v1317
    %vm1325 = vmor %vm1323, %vm1324
    %v1326 = vsel %vm1325, %v1317, %v1322
    %v1327 = vmul.f32 %v1298, %v1326
    %v1328 = vmul.f32 %v1299, %v1326
    %v1329 = vmul.f32 %v1300, %v1326
    %v1330 = vmul.f32 %v1301, %v1326
    %v1331 = vld [vmem:[%s6] sm:$0x1]
    %v1333 = vperm.slane %v1331, 0
    %v1335 = vmul.f32 %v1327, %v1333
    %v1336 = vmul.f32 %v1328, %v1333
    %v1337 = vmul.f32 %v1329, %v1333
    %v1338 = vmul.f32 %v1330, %v1333
    %v1339 = vld [vmem:[%s7] sm:$0x1]
    %v1341 = vperm.slane %v1339, 0
    %v1343 = vadd.f32 %v1335, %v1341
    %v1344 = vadd.f32 %v1336, %v1341
    %v1345 = vadd.f32 %v1337, %v1341
    %v1346 = vadd.f32 %v1338, %v1341
    %v1347 = vmax.f32 %v1343, 0.0
    %v1348 = vmax.f32 %v1344, 0.0
    %v1349 = vmax.f32 %v1345, 0.0
    %v1350 = vmax.f32 %v1346, 0.0
    %v1351 = vadd.f32 %v1347, %v69
    %v1352 = vadd.f32 %v1348, %v71
    %v1353 = vadd.f32 %v1349, %v74
    %v1354 = vadd.f32 %v1350, %v76
    %v1355 = vmax.f32 %v1351, 0.0
    %v1356 = vmax.f32 %v1352, 0.0
    %v1357 = vmax.f32 %v1353, 0.0
    %v1358 = vmax.f32 %v1354, 0.0
    %v1359 = vpack.c.bf16 %v1356, %v1355
    %v1360 = vpack.c.bf16 %v1358, %v1357
    %s1361 = scalar_lea.vmem %s3, 64
    %v1362 = vld [vmem:[%s1361] sm:$0xf]
    %v1363 = vld [vmem:[%s1361 + $0x4] sm:$0xf]
    %v1364 = vld [vmem:[%s1361 + $0x8] sm:$0xf]
    %v1365 = vld [vmem:[%s1361 + $0xc] sm:$0xf]
    %v1366 = vld [vmem:[%s1361 + $0x10] sm:$0xf]
    %v1367 = vld [vmem:[%s1361 + $0x14] sm:$0xf]
    %v1368 = vld [vmem:[%s1361 + $0x18] sm:$0xf]
    %v1369 = vld [vmem:[%s1361 + $0x1c] sm:$0xf]
    %v1370 = vld [vmem:[%s1361 + $0x20] sm:$0xf]
    %v1371 = vld [vmem:[%s1361 + $0x24] sm:$0xf]
    %v1372 = vld [vmem:[%s1361 + $0x28] sm:$0xf]
    %v1373 = vld [vmem:[%s1361 + $0x2c] sm:$0xf]
    %v1374 = vld [vmem:[%s1361 + $0x30] sm:$0xf]
    %v1375 = vld [vmem:[%s1361 + $0x34] sm:$0xf]
    %v1376 = vld [vmem:[%s1361 + $0x38] sm:$0xf]
    %v1377 = vld [vmem:[%s1361 + $0x3c] sm:$0xf]
    %v1394 = vunpack.c.l.b16 %v1362
    %v1395 = vunpack.c.l.b16 %v1363
    %v1396 = vunpack.c.l.b16 %v1364
    %v1397 = vunpack.c.l.b16 %v1365
    %v1398 = vunpack.c.l.b16 %v1366
    %v1399 = vunpack.c.l.b16 %v1367
    %v1400 = vunpack.c.l.b16 %v1368
    %v1401 = vunpack.c.l.b16 %v1369
    %v1402 = vunpack.c.l.b16 %v1370
    %v1403 = vunpack.c.l.b16 %v1371
    %v1404 = vunpack.c.l.b16 %v1372
    %v1405 = vunpack.c.l.b16 %v1373
    %v1406 = vunpack.c.l.b16 %v1374
    %v1407 = vunpack.c.l.b16 %v1375
    %v1408 = vunpack.c.l.b16 %v1376
    %v1409 = vunpack.c.l.b16 %v1377
    %v1410 = vpack.c.b16 %v1395, %v1394
    %v1411 = vpack.c.b16 %v1397, %v1396
    %v1412 = vpack.c.b16 %v1399, %v1398
    %v1413 = vpack.c.b16 %v1401, %v1400
    %v1414 = vpack.c.b16 %v1403, %v1402
    %v1415 = vpack.c.b16 %v1405, %v1404
    %v1416 = vpack.c.b16 %v1407, %v1406
    %v1417 = vpack.c.b16 %v1409, %v1408
    %1426 = vmatpush.bf16.msra.mxu0 %v1417
    %1427 = vmatpush.bf16.msra.mxu0 %v1416
    %1428 = vmatpush.bf16.msra.mxu0 %v1415
    %1429 = vmatpush.bf16.msra.mxu0 %v1414
    %1430 = vmatpush.bf16.msra.mxu0 %v1413
    %1431 = vmatpush.bf16.msra.mxu0 %v1412
    %1432 = vmatpush.bf16.msra.mxu0 %v1411
    %1433 = vmatpush.bf16.msra.mxu0 %v1410
    %1434 = vmatmul.bf16.gmra.mxu0 %v1359
    %v1435 = vpop.f32.mrf.mxu0
    %v1436 = vadd.f32 0.0, %v1435
    %v1437 = vpop.f32.mrf.mxu0
    %v1438 = vadd.f32 0.0, %v1437
    %1439 = vmatmul.bf16.gmra.mxu0 %v1360
    %v1440 = vpop.f32.mrf.mxu0
    %v1441 = vadd.f32 0.0, %v1440
    %v1442 = vpop.f32.mrf.mxu0
    %v1443 = vadd.f32 0.0, %v1442
    %1444 = vdwg.mxu0
    %v1445 = vrot.slane %v1355, 7
    %v1446 = vrot.slane %v1356, 7
    %v1447 = vrot.slane %v1357, 7
    %v1448 = vrot.slane %v1358, 7
    %v1449 = vsel %vm172, %v1447, %v1448
    %v1450 = vsel %vm172, %v1446, %v1447
    %v1451 = vsel %vm172, %v1445, %v1446
    %v1452 = vsel %vm172, %v1448, %v1445
    %v1453 = vsel %vm179, -inf, %v1452
    %v1454 = vsel %vm180, -inf, %v1451
    %v1455 = vsel %vm179, -inf, %v1450
    %v1456 = vsel %vm180, -inf, %v1449
    %v1457 = vmax.f32 %v1355, %v1453
    %v1458 = vmax.f32 %v1356, %v1454
    %v1459 = vmax.f32 %v1357, %v1455
    %v1460 = vmax.f32 %v1358, %v1456
    %v1461 = vrot.slane %v1355, 1
    %v1462 = vrot.slane %v1356, 1
    %v1463 = vrot.slane %v1357, 1
    %v1464 = vrot.slane %v1358, 1
    %v1465 = vsel %vm195, %v1463, %v1464
    %v1466 = vsel %vm195, %v1462, %v1463
    %v1467 = vsel %vm195, %v1461, %v1462
    %v1468 = vsel %vm195, %v1464, %v1461
    %v1469 = vsel %vm202, -inf, %v1467
    %v1470 = vsel %vm203, -inf, %v1466
    %v1471 = vsel %vm202, -inf, %v1465
    %v1472 = vsel %vm203, -inf, %v1468
    %v1473 = vmax.f32 %v1457, %v1469
    %v1474 = vmax.f32 %v1458, %v1470
    %v1475 = vmax.f32 %v1459, %v1471
    %v1476 = vmax.f32 %v1460, %v1472
    %v1477 = vsel %vm212, 0.0, %v1441
    %v1478 = vsel %vm213, 0.0, %v1443
    %v1479 = vsel %vm212, 0.0, %v1436
    %v1480 = vsel %vm213, 0.0, %v1438
    %v1481 = vrot.slane %v1436, 1
    %v1482 = vrot.slane %v1438, 1
    %v1483 = vrot.slane %v1441, 1
    %v1484 = vrot.slane %v1443, 1
    %v1485 = vsel %vm195, %v1483, %v1484
    %v1486 = vsel %vm195, %v1482, %v1483
    %v1487 = vsel %vm195, %v1481, %v1482
    %v1488 = vsel %vm195, %v1484, %v1481
    %v1489 = vsel %vm226, 0.0, %v1485
    %v1490 = vsel %vm227, 0.0, %v1488
    %v1491 = vsel %vm226, 0.0, %v1487
    %v1492 = vsel %vm227, 0.0, %v1486
    %v1493 = vrot.slane %v1436, 2
    %v1494 = vrot.slane %v1438, 2
    %v1495 = vrot.slane %v1441, 2
    %v1496 = vrot.slane %v1443, 2
    %v1497 = vsel %vm236, %v1495, %v1496
    %v1498 = vsel %vm236, %v1494, %v1495
    %v1499 = vsel %vm236, %v1493, %v1494
    %v1500 = vsel %vm236, %v1496, %v1493
    %v1501 = vsel %vm241, 0.0, %v1497
    %v1502 = vsel %vm242, 0.0, %v1500
    %v1503 = vsel %vm241, 0.0, %v1499
    %v1504 = vsel %vm242, 0.0, %v1498
    %v1505 = vrot.slane %v1436, 3
    %v1506 = vrot.slane %v1438, 3
    %v1507 = vrot.slane %v1441, 3
    %v1508 = vrot.slane %v1443, 3
    %v1509 = vsel %vm251, %v1507, %v1508
    %v1510 = vsel %vm251, %v1506, %v1507
    %v1511 = vsel %vm251, %v1505, %v1506
    %v1512 = vsel %vm251, %v1508, %v1505
    %v1513 = vsel %vm256, 0.0, %v1509
    %v1514 = vsel %vm257, 0.0, %v1512
    %v1515 = vsel %vm256, 0.0, %v1511
    %v1516 = vsel %vm257, 0.0, %v1510
    %v1517 = vrot.slane %v1436, 4
    %v1518 = vrot.slane %v1438, 4
    %v1519 = vrot.slane %v1441, 4
    %v1520 = vrot.slane %v1443, 4
    %v1521 = vsel %vm266, %v1519, %v1520
    %v1522 = vsel %vm266, %v1518, %v1519
    %v1523 = vsel %vm266, %v1517, %v1518
    %v1524 = vsel %vm266, %v1520, %v1517
    %v1525 = vsel %vm271, 0.0, %v1521
    %v1526 = vsel %vm272, 0.0, %v1524
    %v1527 = vsel %vm271, 0.0, %v1523
    %v1528 = vsel %vm272, 0.0, %v1522
    %v1529 = vrot.slane %v1436, 5
    %v1530 = vrot.slane %v1438, 5
    %v1531 = vrot.slane %v1441, 5
    %v1532 = vrot.slane %v1443, 5
    %v1533 = vsel %vm281, %v1531, %v1532
    %v1534 = vsel %vm281, %v1530, %v1531
    %v1535 = vsel %vm281, %v1529, %v1530
    %v1536 = vsel %vm281, %v1532, %v1529
    %v1537 = vsel %vm286, 0.0, %v1533
    %v1538 = vsel %vm287, 0.0, %v1536
    %v1539 = vsel %vm286, 0.0, %v1535
    %v1540 = vsel %vm287, 0.0, %v1534
    %v1541 = vrot.slane %v1436, 6
    %v1542 = vrot.slane %v1438, 6
    %v1543 = vrot.slane %v1441, 6
    %v1544 = vrot.slane %v1443, 6
    %v1545 = vsel %vm296, %v1543, %v1544
    %v1546 = vsel %vm296, %v1542, %v1543
    %v1547 = vsel %vm296, %v1541, %v1542
    %v1548 = vsel %vm296, %v1544, %v1541
    %v1549 = vsel %vm301, 0.0, %v1545
    %v1550 = vsel %vm302, 0.0, %v1548
    %v1551 = vsel %vm301, 0.0, %v1547
    %v1552 = vsel %vm302, 0.0, %v1546
    %v1553 = vrot.slane %v1436, 7
    %v1554 = vrot.slane %v1438, 7
    %v1555 = vrot.slane %v1441, 7
    %v1556 = vrot.slane %v1443, 7
    %v1557 = vsel %vm172, %v1555, %v1556
    %v1558 = vsel %vm172, %v1554, %v1555
    %v1559 = vsel %vm172, %v1553, %v1554
    %v1560 = vsel %vm172, %v1556, %v1553
    %v1561 = vsel %vm315, 0.0, %v1557
    %v1562 = vsel %vm316, 0.0, %v1560
    %v1563 = vsel %vm315, 0.0, %v1559
    %v1564 = vsel %vm316, 0.0, %v1558
    %v1565 = vsel %vm321, 0.0, %v1443
    %v1566 = vsel %vm322, 0.0, %v1436
    %v1567 = vsel %vm321, 0.0, %v1438
    %v1568 = vsel %vm322, 0.0, %v1441
    %v1569 = vsel %vm195, 0.0, %v1488
    %v1570 = vsel %vm327, 0.0, %v1487
    %v1571 = vsel %vm195, 0.0, %v1486
    %v1572 = vsel %vm327, 0.0, %v1485
    %v1573 = vsel %vm236, 0.0, %v1500
    %v1574 = vsel %vm332, 0.0, %v1499
    %v1575 = vsel %vm236, 0.0, %v1498
    %v1576 = vsel %vm332, 0.0, %v1497
    %v1577 = vsel %vm251, 0.0, %v1512
    %v1578 = vsel %vm337, 0.0, %v1511
    %v1579 = vsel %vm251, 0.0, %v1510
    %v1580 = vsel %vm337, 0.0, %v1509
    %v1581 = vsel %vm266, 0.0, %v1524
    %v1582 = vsel %vm342, 0.0, %v1523
    %v1583 = vsel %vm266, 0.0, %v1522
    %v1584 = vsel %vm342, 0.0, %v1521
    %v1585 = vsel %vm281, 0.0, %v1536
    %v1586 = vsel %vm347, 0.0, %v1535
    %v1587 = vsel %vm281, 0.0, %v1534
    %v1588 = vsel %vm347, 0.0, %v1533
    %v1589 = vsel %vm296, 0.0, %v1548
    %v1590 = vsel %vm352, 0.0, %v1547
    %v1591 = vsel %vm296, 0.0, %v1546
    %v1592 = vsel %vm352, 0.0, %v1545
    %v1593 = vsel %vm172, 0.0, %v1560
    %v1594 = vsel %vm357, 0.0, %v1559
    %v1595 = vsel %vm172, 0.0, %v1558
    %v1596 = vsel %vm357, 0.0, %v1557
    %v1597 = vsel %vm362, 0.0, %v1487
    %v1598 = vsel %vm363, 0.0, %v1486
    %v1599 = vsel %vm362, 0.0, %v1485
    %v1600 = vsel %vm363, 0.0, %v1488
    %v1601 = vsel %vm368, 0.0, %v1499
    %v1602 = vsel %vm369, 0.0, %v1498
    %v1603 = vsel %vm368, 0.0, %v1497
    %v1604 = vsel %vm369, 0.0, %v1500
    %v1605 = vsel %vm374, 0.0, %v1511
    %v1606 = vsel %vm375, 0.0, %v1510
    %v1607 = vsel %vm374, 0.0, %v1509
    %v1608 = vsel %vm375, 0.0, %v1512
    %v1609 = vsel %vm380, 0.0, %v1523
    %v1610 = vsel %vm381, 0.0, %v1522
    %v1611 = vsel %vm380, 0.0, %v1521
    %v1612 = vsel %vm381, 0.0, %v1524
    %v1613 = vsel %vm386, 0.0, %v1535
    %v1614 = vsel %vm387, 0.0, %v1534
    %v1615 = vsel %vm386, 0.0, %v1533
    %v1616 = vsel %vm387, 0.0, %v1536
    %v1617 = vsel %vm392, 0.0, %v1547
    %v1618 = vsel %vm393, 0.0, %v1546
    %v1619 = vsel %vm392, 0.0, %v1545
    %v1620 = vsel %vm393, 0.0, %v1548
    %v1621 = vsel %vm398, 0.0, %v1559
    %v1622 = vsel %vm399, 0.0, %v1558
    %v1623 = vsel %vm398, 0.0, %v1557
    %v1624 = vsel %vm399, 0.0, %v1560
    %v1625 = vsel %vm404, 0.0, %v1438
    %v1626 = vsel %vm405, 0.0, %v1441
    %v1627 = vsel %vm404, 0.0, %v1443
    %v1628 = vsel %vm405, 0.0, %v1436
    %v1629 = vsel %vm410, 0.0, %v1486
    %v1630 = vsel %vm411, 0.0, %v1485
    %v1631 = vsel %vm410, 0.0, %v1488
    %v1632 = vsel %vm411, 0.0, %v1487
    %v1633 = vsel %vm416, 0.0, %v1498
    %v1634 = vsel %vm417, 0.0, %v1497
    %v1635 = vsel %vm416, 0.0, %v1500
    %v1636 = vsel %vm417, 0.0, %v1499
    %v1637 = vsel %vm422, 0.0, %v1510
    %v1638 = vsel %vm423, 0.0, %v1509
    %v1639 = vsel %vm422, 0.0, %v1512
    %v1640 = vsel %vm423, 0.0, %v1511
    %v1641 = vsel %vm428, 0.0, %v1522
    %v1642 = vsel %vm429, 0.0, %v1521
    %v1643 = vsel %vm428, 0.0, %v1524
    %v1644 = vsel %vm429, 0.0, %v1523
    %v1645 = vsel %vm434, 0.0, %v1534
    %v1646 = vsel %vm435, 0.0, %v1533
    %v1647 = vsel %vm434, 0.0, %v1536
    %v1648 = vsel %vm435, 0.0, %v1535
    %v1649 = vsel %vm440, 0.0, %v1546
    %v1650 = vsel %vm441, 0.0, %v1545
    %v1651 = vsel %vm440, 0.0, %v1548
    %v1652 = vsel %vm441, 0.0, %v1547
    %v1653 = vsel %vm446, 0.0, %v1558
    %v1654 = vsel %vm447, 0.0, %v1557
    %v1655 = vsel %vm446, 0.0, %v1560
    %v1656 = vsel %vm447, 0.0, %v1559
    %v1657 = vsel %vm452, 0.0, %v1441
    %v1658 = vsel %vm453, 0.0, %v1443
    %v1659 = vsel %vm452, 0.0, %v1436
    %v1660 = vsel %vm453, 0.0, %v1438
    %1665 = vrot.lane.b32.xlu0 %v1489, 1
    %v1666 = vpop.permute.xlu0 %1665
    %1667 = vrot.lane.b32.xlu0 %v1490, 1
    %v1668 = vpop.permute.xlu0 %1667
    %1669 = vrot.lane.b32.xlu0 %v1491, 1
    %v1670 = vpop.permute.xlu0 %1669
    %1671 = vrot.lane.b32.xlu0 %v1492, 1
    %v1672 = vpop.permute.xlu0 %1671
    %1681 = vrot.lane.b32.xlu0 %v1501, 2
    %v1682 = vpop.permute.xlu0 %1681
    %1683 = vrot.lane.b32.xlu0 %v1502, 2
    %v1684 = vpop.permute.xlu0 %1683
    %1685 = vrot.lane.b32.xlu0 %v1503, 2
    %v1686 = vpop.permute.xlu0 %1685
    %1687 = vrot.lane.b32.xlu0 %v1504, 2
    %v1688 = vpop.permute.xlu0 %1687
    %1697 = vrot.lane.b32.xlu0 %v1513, 3
    %v1698 = vpop.permute.xlu0 %1697
    %1699 = vrot.lane.b32.xlu0 %v1514, 3
    %v1700 = vpop.permute.xlu0 %1699
    %1701 = vrot.lane.b32.xlu0 %v1515, 3
    %v1702 = vpop.permute.xlu0 %1701
    %1703 = vrot.lane.b32.xlu0 %v1516, 3
    %v1704 = vpop.permute.xlu0 %1703
    %1713 = vrot.lane.b32.xlu0 %v1525, 4
    %v1714 = vpop.permute.xlu0 %1713
    %1715 = vrot.lane.b32.xlu0 %v1526, 4
    %v1716 = vpop.permute.xlu0 %1715
    %1717 = vrot.lane.b32.xlu0 %v1527, 4
    %v1718 = vpop.permute.xlu0 %1717
    %1719 = vrot.lane.b32.xlu0 %v1528, 4
    %v1720 = vpop.permute.xlu0 %1719
    %1729 = vrot.lane.b32.xlu0 %v1537, 5
    %v1730 = vpop.permute.xlu0 %1729
    %1731 = vrot.lane.b32.xlu0 %v1538, 5
    %v1732 = vpop.permute.xlu0 %1731
    %1733 = vrot.lane.b32.xlu0 %v1539, 5
    %v1734 = vpop.permute.xlu0 %1733
    %1735 = vrot.lane.b32.xlu0 %v1540, 5
    %v1736 = vpop.permute.xlu0 %1735
    %1745 = vrot.lane.b32.xlu0 %v1549, 6
    %v1746 = vpop.permute.xlu0 %1745
    %1747 = vrot.lane.b32.xlu0 %v1550, 6
    %v1748 = vpop.permute.xlu0 %1747
    %1749 = vrot.lane.b32.xlu0 %v1551, 6
    %v1750 = vpop.permute.xlu0 %1749
    %1751 = vrot.lane.b32.xlu0 %v1552, 6
    %v1752 = vpop.permute.xlu0 %1751
    %1761 = vrot.lane.b32.xlu0 %v1561, 7
    %v1762 = vpop.permute.xlu0 %1761
    %1763 = vrot.lane.b32.xlu0 %v1562, 7
    %v1764 = vpop.permute.xlu0 %1763
    %1765 = vrot.lane.b32.xlu0 %v1563, 7
    %v1766 = vpop.permute.xlu0 %1765
    %1767 = vrot.lane.b32.xlu0 %v1564, 7
    %v1768 = vpop.permute.xlu0 %1767
    %1777 = vrot.lane.b32.xlu0 %v1565, 8
    %v1778 = vpop.permute.xlu0 %1777
    %1779 = vrot.lane.b32.xlu0 %v1566, 8
    %v1780 = vpop.permute.xlu0 %1779
    %1781 = vrot.lane.b32.xlu0 %v1567, 8
    %v1782 = vpop.permute.xlu0 %1781
    %1783 = vrot.lane.b32.xlu0 %v1568, 8
    %v1784 = vpop.permute.xlu0 %1783
    %1793 = vrot.lane.b32.xlu0 %v1569, 9
    %v1794 = vpop.permute.xlu0 %1793
    %1795 = vrot.lane.b32.xlu0 %v1570, 9
    %v1796 = vpop.permute.xlu0 %1795
    %1797 = vrot.lane.b32.xlu0 %v1571, 9
    %v1798 = vpop.permute.xlu0 %1797
    %1799 = vrot.lane.b32.xlu0 %v1572, 9
    %v1800 = vpop.permute.xlu0 %1799
    %1809 = vrot.lane.b32.xlu0 %v1573, 10
    %v1810 = vpop.permute.xlu0 %1809
    %1811 = vrot.lane.b32.xlu0 %v1574, 10
    %v1812 = vpop.permute.xlu0 %1811
    %1813 = vrot.lane.b32.xlu0 %v1575, 10
    %v1814 = vpop.permute.xlu0 %1813
    %1815 = vrot.lane.b32.xlu0 %v1576, 10
    %v1816 = vpop.permute.xlu0 %1815
    %1825 = vrot.lane.b32.xlu0 %v1577, 11
    %v1826 = vpop.permute.xlu0 %1825
    %1827 = vrot.lane.b32.xlu0 %v1578, 11
    %v1828 = vpop.permute.xlu0 %1827
    %1829 = vrot.lane.b32.xlu0 %v1579, 11
    %v1830 = vpop.permute.xlu0 %1829
    %1831 = vrot.lane.b32.xlu0 %v1580, 11
    %v1832 = vpop.permute.xlu0 %1831
    %1841 = vrot.lane.b32.xlu0 %v1581, 12
    %v1842 = vpop.permute.xlu0 %1841
    %1843 = vrot.lane.b32.xlu0 %v1582, 12
    %v1844 = vpop.permute.xlu0 %1843
    %1845 = vrot.lane.b32.xlu0 %v1583, 12
    %v1846 = vpop.permute.xlu0 %1845
    %1847 = vrot.lane.b32.xlu0 %v1584, 12
    %v1848 = vpop.permute.xlu0 %1847
    %1857 = vrot.lane.b32.xlu0 %v1585, 13
    %v1858 = vpop.permute.xlu0 %1857
    %1859 = vrot.lane.b32.xlu0 %v1586, 13
    %v1860 = vpop.permute.xlu0 %1859
    %1861 = vrot.lane.b32.xlu0 %v1587, 13
    %v1862 = vpop.permute.xlu0 %1861
    %1863 = vrot.lane.b32.xlu0 %v1588, 13
    %v1864 = vpop.permute.xlu0 %1863
    %1873 = vrot.lane.b32.xlu0 %v1589, 14
    %v1874 = vpop.permute.xlu0 %1873
    %1875 = vrot.lane.b32.xlu0 %v1590, 14
    %v1876 = vpop.permute.xlu0 %1875
    %1877 = vrot.lane.b32.xlu0 %v1591, 14
    %v1878 = vpop.permute.xlu0 %1877
    %1879 = vrot.lane.b32.xlu0 %v1592, 14
    %v1880 = vpop.permute.xlu0 %1879
    %1889 = vrot.lane.b32.xlu0 %v1593, 15
    %v1890 = vpop.permute.xlu0 %1889
    %1891 = vrot.lane.b32.xlu0 %v1594, 15
    %v1892 = vpop.permute.xlu0 %1891
    %1893 = vrot.lane.b32.xlu0 %v1595, 15
    %v1894 = vpop.permute.xlu0 %1893
    %1895 = vrot.lane.b32.xlu0 %v1596, 15
    %v1896 = vpop.permute.xlu0 %1895
    %v1901 = vsel %vm698, %v1477, %v1666
    %v1902 = vsel %vm698, %v1478, %v1668
    %v1903 = vsel %vm698, %v1479, %v1670
    %v1904 = vsel %vm698, %v1480, %v1672
    %v1905 = vsel %vm703, %v1901, %v1682
    %v1906 = vsel %vm703, %v1902, %v1684
    %v1907 = vsel %vm703, %v1903, %v1686
    %v1908 = vsel %vm703, %v1904, %v1688
    %v1909 = vsel %vm708, %v1905, %v1698
    %v1910 = vsel %vm708, %v1906, %v1700
    %v1911 = vsel %vm708, %v1907, %v1702
    %v1912 = vsel %vm708, %v1908, %v1704
    %v1913 = vsel %vm48, %v1909, %v1714
    %v1914 = vsel %vm48, %v1910, %v1716
    %v1915 = vsel %vm48, %v1911, %v1718
    %v1916 = vsel %vm48, %v1912, %v1720
    %v1917 = vsel %vm717, %v1913, %v1730
    %v1918 = vsel %vm717, %v1914, %v1732
    %v1919 = vsel %vm717, %v1915, %v1734
    %v1920 = vsel %vm717, %v1916, %v1736
    %v1921 = vsel %vm722, %v1917, %v1746
    %v1922 = vsel %vm722, %v1918, %v1748
    %v1923 = vsel %vm722, %v1919, %v1750
    %v1924 = vsel %vm722, %v1920, %v1752
    %v1925 = vsel %vm727, %v1921, %v1762
    %v1926 = vsel %vm727, %v1922, %v1764
    %v1927 = vsel %vm727, %v1923, %v1766
    %v1928 = vsel %vm727, %v1924, %v1768
    %v1929 = vsel %vm732, %v1925, %v1778
    %v1930 = vsel %vm732, %v1926, %v1780
    %v1931 = vsel %vm732, %v1927, %v1782
    %v1932 = vsel %vm732, %v1928, %v1784
    %v1933 = vsel %vm737, %v1929, %v1794
    %v1934 = vsel %vm737, %v1930, %v1796
    %v1935 = vsel %vm737, %v1931, %v1798
    %v1936 = vsel %vm737, %v1932, %v1800
    %v1937 = vsel %vm742, %v1933, %v1810
    %v1938 = vsel %vm742, %v1934, %v1812
    %v1939 = vsel %vm742, %v1935, %v1814
    %v1940 = vsel %vm742, %v1936, %v1816
    %v1941 = vsel %vm747, %v1937, %v1826
    %v1942 = vsel %vm747, %v1938, %v1828
    %v1943 = vsel %vm747, %v1939, %v1830
    %v1944 = vsel %vm747, %v1940, %v1832
    %v1945 = vsel %vm752, %v1941, %v1842
    %v1946 = vsel %vm752, %v1942, %v1844
    %v1947 = vsel %vm752, %v1943, %v1846
    %v1948 = vsel %vm752, %v1944, %v1848
    %v1949 = vsel %vm757, %v1945, %v1858
    %v1950 = vsel %vm757, %v1946, %v1860
    %v1951 = vsel %vm757, %v1947, %v1862
    %v1952 = vsel %vm757, %v1948, %v1864
    %v1953 = vsel %vm762, %v1949, %v1874
    %v1954 = vsel %vm762, %v1950, %v1876
    %v1955 = vsel %vm762, %v1951, %v1878
    %v1956 = vsel %vm762, %v1952, %v1880
    %v1957 = vsel %vm767, %v1953, %v1890
    %v1958 = vsel %vm767, %v1954, %v1892
    %v1959 = vsel %vm767, %v1955, %v1894
    %v1960 = vsel %vm767, %v1956, %v1896
    %1965 = vrot.lane.b32.xlu0 %v1597, 1
    %v1966 = vpop.permute.xlu0 %1965
    %1967 = vrot.lane.b32.xlu0 %v1598, 1
    %v1968 = vpop.permute.xlu0 %1967
    %1969 = vrot.lane.b32.xlu0 %v1599, 1
    %v1970 = vpop.permute.xlu0 %1969
    %1971 = vrot.lane.b32.xlu0 %v1600, 1
    %v1972 = vpop.permute.xlu0 %1971
    %1981 = vrot.lane.b32.xlu0 %v1601, 2
    %v1982 = vpop.permute.xlu0 %1981
    %1983 = vrot.lane.b32.xlu0 %v1602, 2
    %v1984 = vpop.permute.xlu0 %1983
    %1985 = vrot.lane.b32.xlu0 %v1603, 2
    %v1986 = vpop.permute.xlu0 %1985
    %1987 = vrot.lane.b32.xlu0 %v1604, 2
    %v1988 = vpop.permute.xlu0 %1987
    %1997 = vrot.lane.b32.xlu0 %v1605, 3
    %v1998 = vpop.permute.xlu0 %1997
    %1999 = vrot.lane.b32.xlu0 %v1606, 3
    %v2000 = vpop.permute.xlu0 %1999
    %2001 = vrot.lane.b32.xlu0 %v1607, 3
    %v2002 = vpop.permute.xlu0 %2001
    %2003 = vrot.lane.b32.xlu0 %v1608, 3
    %v2004 = vpop.permute.xlu0 %2003
    %2013 = vrot.lane.b32.xlu0 %v1609, 4
    %v2014 = vpop.permute.xlu0 %2013
    %2015 = vrot.lane.b32.xlu0 %v1610, 4
    %v2016 = vpop.permute.xlu0 %2015
    %2017 = vrot.lane.b32.xlu0 %v1611, 4
    %v2018 = vpop.permute.xlu0 %2017
    %2019 = vrot.lane.b32.xlu0 %v1612, 4
    %v2020 = vpop.permute.xlu0 %2019
    %2029 = vrot.lane.b32.xlu0 %v1613, 5
    %v2030 = vpop.permute.xlu0 %2029
    %2031 = vrot.lane.b32.xlu0 %v1614, 5
    %v2032 = vpop.permute.xlu0 %2031
    %2033 = vrot.lane.b32.xlu0 %v1615, 5
    %v2034 = vpop.permute.xlu0 %2033
    %2035 = vrot.lane.b32.xlu0 %v1616, 5
    %v2036 = vpop.permute.xlu0 %2035
    %2045 = vrot.lane.b32.xlu0 %v1617, 6
    %v2046 = vpop.permute.xlu0 %2045
    %2047 = vrot.lane.b32.xlu0 %v1618, 6
    %v2048 = vpop.permute.xlu0 %2047
    %2049 = vrot.lane.b32.xlu0 %v1619, 6
    %v2050 = vpop.permute.xlu0 %2049
    %2051 = vrot.lane.b32.xlu0 %v1620, 6
    %v2052 = vpop.permute.xlu0 %2051
    %2061 = vrot.lane.b32.xlu0 %v1621, 7
    %v2062 = vpop.permute.xlu0 %2061
    %2063 = vrot.lane.b32.xlu0 %v1622, 7
    %v2064 = vpop.permute.xlu0 %2063
    %2065 = vrot.lane.b32.xlu0 %v1623, 7
    %v2066 = vpop.permute.xlu0 %2065
    %2067 = vrot.lane.b32.xlu0 %v1624, 7
    %v2068 = vpop.permute.xlu0 %2067
    %2077 = vrot.lane.b32.xlu0 %v1625, 8
    %v2078 = vpop.permute.xlu0 %2077
    %2079 = vrot.lane.b32.xlu0 %v1626, 8
    %v2080 = vpop.permute.xlu0 %2079
    %2081 = vrot.lane.b32.xlu0 %v1627, 8
    %v2082 = vpop.permute.xlu0 %2081
    %2083 = vrot.lane.b32.xlu0 %v1628, 8
    %v2084 = vpop.permute.xlu0 %2083
    %2093 = vrot.lane.b32.xlu0 %v1629, 9
    %v2094 = vpop.permute.xlu0 %2093
    %2095 = vrot.lane.b32.xlu0 %v1630, 9
    %v2096 = vpop.permute.xlu0 %2095
    %2097 = vrot.lane.b32.xlu0 %v1631, 9
    %v2098 = vpop.permute.xlu0 %2097
    %2099 = vrot.lane.b32.xlu0 %v1632, 9
    %v2100 = vpop.permute.xlu0 %2099
    %2109 = vrot.lane.b32.xlu0 %v1633, 10
    %v2110 = vpop.permute.xlu0 %2109
    %2111 = vrot.lane.b32.xlu0 %v1634, 10
    %v2112 = vpop.permute.xlu0 %2111
    %2113 = vrot.lane.b32.xlu0 %v1635, 10
    %v2114 = vpop.permute.xlu0 %2113
    %2115 = vrot.lane.b32.xlu0 %v1636, 10
    %v2116 = vpop.permute.xlu0 %2115
    %2125 = vrot.lane.b32.xlu0 %v1637, 11
    %v2126 = vpop.permute.xlu0 %2125
    %2127 = vrot.lane.b32.xlu0 %v1638, 11
    %v2128 = vpop.permute.xlu0 %2127
    %2129 = vrot.lane.b32.xlu0 %v1639, 11
    %v2130 = vpop.permute.xlu0 %2129
    %2131 = vrot.lane.b32.xlu0 %v1640, 11
    %v2132 = vpop.permute.xlu0 %2131
    %2141 = vrot.lane.b32.xlu0 %v1641, 12
    %v2142 = vpop.permute.xlu0 %2141
    %2143 = vrot.lane.b32.xlu0 %v1642, 12
    %v2144 = vpop.permute.xlu0 %2143
    %2145 = vrot.lane.b32.xlu0 %v1643, 12
    %v2146 = vpop.permute.xlu0 %2145
    %2147 = vrot.lane.b32.xlu0 %v1644, 12
    %v2148 = vpop.permute.xlu0 %2147
    %2157 = vrot.lane.b32.xlu0 %v1645, 13
    %v2158 = vpop.permute.xlu0 %2157
    %2159 = vrot.lane.b32.xlu0 %v1646, 13
    %v2160 = vpop.permute.xlu0 %2159
    %2161 = vrot.lane.b32.xlu0 %v1647, 13
    %v2162 = vpop.permute.xlu0 %2161
    %2163 = vrot.lane.b32.xlu0 %v1648, 13
    %v2164 = vpop.permute.xlu0 %2163
    %2173 = vrot.lane.b32.xlu0 %v1649, 14
    %v2174 = vpop.permute.xlu0 %2173
    %2175 = vrot.lane.b32.xlu0 %v1650, 14
    %v2176 = vpop.permute.xlu0 %2175
    %2177 = vrot.lane.b32.xlu0 %v1651, 14
    %v2178 = vpop.permute.xlu0 %2177
    %2179 = vrot.lane.b32.xlu0 %v1652, 14
    %v2180 = vpop.permute.xlu0 %2179
    %2189 = vrot.lane.b32.xlu0 %v1653, 15
    %v2190 = vpop.permute.xlu0 %2189
    %2191 = vrot.lane.b32.xlu0 %v1654, 15
    %v2192 = vpop.permute.xlu0 %2191
    %2193 = vrot.lane.b32.xlu0 %v1655, 15
    %v2194 = vpop.permute.xlu0 %2193
    %2195 = vrot.lane.b32.xlu0 %v1656, 15
    %v2196 = vpop.permute.xlu0 %2195
    %v2201 = vsel %vm698, %v1436, %v1966
    %v2202 = vsel %vm698, %v1438, %v1968
    %v2203 = vsel %vm698, %v1441, %v1970
    %v2204 = vsel %vm698, %v1443, %v1972
    %v2205 = vsel %vm703, %v2201, %v1982
    %v2206 = vsel %vm703, %v2202, %v1984
    %v2207 = vsel %vm703, %v2203, %v1986
    %v2208 = vsel %vm703, %v2204, %v1988
    %v2209 = vsel %vm708, %v2205, %v1998
    %v2210 = vsel %vm708, %v2206, %v2000
    %v2211 = vsel %vm708, %v2207, %v2002
    %v2212 = vsel %vm708, %v2208, %v2004
    %v2213 = vsel %vm48, %v2209, %v2014
    %v2214 = vsel %vm48, %v2210, %v2016
    %v2215 = vsel %vm48, %v2211, %v2018
    %v2216 = vsel %vm48, %v2212, %v2020
    %v2217 = vsel %vm717, %v2213, %v2030
    %v2218 = vsel %vm717, %v2214, %v2032
    %v2219 = vsel %vm717, %v2215, %v2034
    %v2220 = vsel %vm717, %v2216, %v2036
    %v2221 = vsel %vm722, %v2217, %v2046
    %v2222 = vsel %vm722, %v2218, %v2048
    %v2223 = vsel %vm722, %v2219, %v2050
    %v2224 = vsel %vm722, %v2220, %v2052
    %v2225 = vsel %vm727, %v2221, %v2062
    %v2226 = vsel %vm727, %v2222, %v2064
    %v2227 = vsel %vm727, %v2223, %v2066
    %v2228 = vsel %vm727, %v2224, %v2068
    %v2229 = vsel %vm732, %v2225, %v2078
    %v2230 = vsel %vm732, %v2226, %v2080
    %v2231 = vsel %vm732, %v2227, %v2082
    %v2232 = vsel %vm732, %v2228, %v2084
    %v2233 = vsel %vm737, %v2229, %v2094
    %v2234 = vsel %vm737, %v2230, %v2096
    %v2235 = vsel %vm737, %v2231, %v2098
    %v2236 = vsel %vm737, %v2232, %v2100
    %v2237 = vsel %vm742, %v2233, %v2110
    %v2238 = vsel %vm742, %v2234, %v2112
    %v2239 = vsel %vm742, %v2235, %v2114
    %v2240 = vsel %vm742, %v2236, %v2116
    %v2241 = vsel %vm747, %v2237, %v2126
    %v2242 = vsel %vm747, %v2238, %v2128
    %v2243 = vsel %vm747, %v2239, %v2130
    %v2244 = vsel %vm747, %v2240, %v2132
    %v2245 = vsel %vm752, %v2241, %v2142
    %v2246 = vsel %vm752, %v2242, %v2144
    %v2247 = vsel %vm752, %v2243, %v2146
    %v2248 = vsel %vm752, %v2244, %v2148
    %v2249 = vsel %vm757, %v2245, %v2158
    %v2250 = vsel %vm757, %v2246, %v2160
    %v2251 = vsel %vm757, %v2247, %v2162
    %v2252 = vsel %vm757, %v2248, %v2164
    %v2253 = vsel %vm762, %v2249, %v2174
    %v2254 = vsel %vm762, %v2250, %v2176
    %v2255 = vsel %vm762, %v2251, %v2178
    %v2256 = vsel %vm762, %v2252, %v2180
    %v2257 = vsel %vm767, %v2253, %v2190
    %v2258 = vsel %vm767, %v2254, %v2192
    %v2259 = vsel %vm767, %v2255, %v2194
    %v2260 = vsel %vm767, %v2256, %v2196
    %v2261 = vsel %vm698, %v1657, 0.0
    %v2262 = vsel %vm698, %v1658, 0.0
    %v2263 = vsel %vm698, %v1659, 0.0
    %v2264 = vsel %vm698, %v1660, 0.0
    %2269 = vrot.lane.b32.xlu0 %v2257, 16
    %v2270 = vpop.permute.xlu0 %2269
    %2271 = vrot.lane.b32.xlu0 %v2258, 16
    %v2272 = vpop.permute.xlu0 %2271
    %2273 = vrot.lane.b32.xlu0 %v2259, 16
    %v2274 = vpop.permute.xlu0 %2273
    %2275 = vrot.lane.b32.xlu0 %v2260, 16
    %v2276 = vpop.permute.xlu0 %2275
    %2285 = vrot.lane.b32.xlu0 %v2261, 32
    %v2286 = vpop.permute.xlu0 %2285
    %2287 = vrot.lane.b32.xlu0 %v2262, 32
    %v2288 = vpop.permute.xlu0 %2287
    %2289 = vrot.lane.b32.xlu0 %v2263, 32
    %v2290 = vpop.permute.xlu0 %2289
    %2291 = vrot.lane.b32.xlu0 %v2264, 32
    %v2292 = vpop.permute.xlu0 %2291
    %v2297 = vsel %vm1108, %v1957, %v2270
    %v2298 = vsel %vm1108, %v1958, %v2272
    %v2299 = vsel %vm1108, %v1959, %v2274
    %v2300 = vsel %vm1108, %v1960, %v2276
    %v2301 = vsel %vm1113, %v2297, %v2286
    %v2302 = vsel %vm1113, %v2298, %v2288
    %v2303 = vsel %vm1113, %v2299, %v2290
    %v2304 = vsel %vm1113, %v2300, %v2292
    %v2305 = vpack.c.bf16 %v2302, %v2301
    %v2306 = vpack.c.bf16 %v2304, %v2303
    %s2307 = scalar_lea.vmem %s4, 64
    %v2308 = vld [vmem:[%s2307] sm:$0xf]
    %v2309 = vld [vmem:[%s2307 + $0x4] sm:$0xf]
    %v2310 = vld [vmem:[%s2307 + $0x8] sm:$0xf]
    %v2311 = vld [vmem:[%s2307 + $0xc] sm:$0xf]
    %v2312 = vld [vmem:[%s2307 + $0x10] sm:$0xf]
    %v2313 = vld [vmem:[%s2307 + $0x14] sm:$0xf]
    %v2314 = vld [vmem:[%s2307 + $0x18] sm:$0xf]
    %v2315 = vld [vmem:[%s2307 + $0x1c] sm:$0xf]
    %v2316 = vld [vmem:[%s2307 + $0x20] sm:$0xf]
    %v2317 = vld [vmem:[%s2307 + $0x24] sm:$0xf]
    %v2318 = vld [vmem:[%s2307 + $0x28] sm:$0xf]
    %v2319 = vld [vmem:[%s2307 + $0x2c] sm:$0xf]
    %v2320 = vld [vmem:[%s2307 + $0x30] sm:$0xf]
    %v2321 = vld [vmem:[%s2307 + $0x34] sm:$0xf]
    %v2322 = vld [vmem:[%s2307 + $0x38] sm:$0xf]
    %v2323 = vld [vmem:[%s2307 + $0x3c] sm:$0xf]
    %v2324 = vpack.c.bf16 %v1474, %v1473
    %v2325 = vpack.c.bf16 %v1476, %v1475
    %s2326 = scalar_lea.vmem %s5, 64
    %v2327 = vld [vmem:[%s2326] sm:$0xf]
    %v2328 = vld [vmem:[%s2326 + $0x4] sm:$0xf]
    %v2329 = vld [vmem:[%s2326 + $0x8] sm:$0xf]
    %v2330 = vld [vmem:[%s2326 + $0xc] sm:$0xf]
    %v2331 = vld [vmem:[%s2326 + $0x10] sm:$0xf]
    %v2332 = vld [vmem:[%s2326 + $0x14] sm:$0xf]
    %v2333 = vld [vmem:[%s2326 + $0x18] sm:$0xf]
    %v2334 = vld [vmem:[%s2326 + $0x1c] sm:$0xf]
    %v2335 = vld [vmem:[%s2326 + $0x20] sm:$0xf]
    %v2336 = vld [vmem:[%s2326 + $0x24] sm:$0xf]
    %v2337 = vld [vmem:[%s2326 + $0x28] sm:$0xf]
    %v2338 = vld [vmem:[%s2326 + $0x2c] sm:$0xf]
    %v2339 = vld [vmem:[%s2326 + $0x30] sm:$0xf]
    %v2340 = vld [vmem:[%s2326 + $0x34] sm:$0xf]
    %v2341 = vld [vmem:[%s2326 + $0x38] sm:$0xf]
    %v2342 = vld [vmem:[%s2326 + $0x3c] sm:$0xf]
    %v2359 = vunpack.c.l.b16 %v2327
    %v2360 = vunpack.c.l.b16 %v2328
    %v2361 = vunpack.c.l.b16 %v2329
    %v2362 = vunpack.c.l.b16 %v2330
    %v2363 = vunpack.c.l.b16 %v2331
    %v2364 = vunpack.c.l.b16 %v2332
    %v2365 = vunpack.c.l.b16 %v2333
    %v2366 = vunpack.c.l.b16 %v2334
    %v2367 = vunpack.c.l.b16 %v2335
    %v2368 = vunpack.c.l.b16 %v2336
    %v2369 = vunpack.c.l.b16 %v2337
    %v2370 = vunpack.c.l.b16 %v2338
    %v2371 = vunpack.c.l.b16 %v2339
    %v2372 = vunpack.c.l.b16 %v2340
    %v2373 = vunpack.c.l.b16 %v2341
    %v2374 = vunpack.c.l.b16 %v2342
    %v2375 = vpack.c.b16 %v2360, %v2359
    %v2376 = vpack.c.b16 %v2362, %v2361
    %v2377 = vpack.c.b16 %v2364, %v2363
    %v2378 = vpack.c.b16 %v2366, %v2365
    %v2379 = vpack.c.b16 %v2368, %v2367
    %v2380 = vpack.c.b16 %v2370, %v2369
    %v2381 = vpack.c.b16 %v2372, %v2371
    %v2382 = vpack.c.b16 %v2374, %v2373
    %2391 = vmatpush.bf16.msra.mxu0 %v2382
    %2392 = vmatpush.bf16.msra.mxu0 %v2381
    %2393 = vmatpush.bf16.msra.mxu0 %v2380
    %2394 = vmatpush.bf16.msra.mxu0 %v2379
    %2395 = vmatpush.bf16.msra.mxu0 %v2378
    %2396 = vmatpush.bf16.msra.mxu0 %v2377
    %2397 = vmatpush.bf16.msra.mxu0 %v2376
    %2398 = vmatpush.bf16.msra.mxu0 %v2375
    %2399 = vmatmul.bf16.gmra.mxu0 %v2324
    %v2400 = vpop.f32.mrf.mxu0
    %v2401 = vadd.f32 0.0, %v2400
    %v2402 = vpop.f32.mrf.mxu0
    %v2403 = vadd.f32 0.0, %v2402
    %2404 = vmatmul.bf16.gmra.mxu0 %v2325
    %v2405 = vpop.f32.mrf.mxu0
    %v2406 = vadd.f32 0.0, %v2405
    %v2407 = vpop.f32.mrf.mxu0
    %v2408 = vadd.f32 0.0, %v2407
    %2409 = vdwg.mxu0
    %v2426 = vunpack.c.l.b16 %v2308
    %v2427 = vunpack.c.l.b16 %v2309
    %v2428 = vunpack.c.l.b16 %v2310
    %v2429 = vunpack.c.l.b16 %v2311
    %v2430 = vunpack.c.l.b16 %v2312
    %v2431 = vunpack.c.l.b16 %v2313
    %v2432 = vunpack.c.l.b16 %v2314
    %v2433 = vunpack.c.l.b16 %v2315
    %v2434 = vunpack.c.l.b16 %v2316
    %v2435 = vunpack.c.l.b16 %v2317
    %v2436 = vunpack.c.l.b16 %v2318
    %v2437 = vunpack.c.l.b16 %v2319
    %v2438 = vunpack.c.l.b16 %v2320
    %v2439 = vunpack.c.l.b16 %v2321
    %v2440 = vunpack.c.l.b16 %v2322
    %v2441 = vunpack.c.l.b16 %v2323
    %v2442 = vpack.c.b16 %v2427, %v2426
    %v2443 = vpack.c.b16 %v2429, %v2428
    %v2444 = vpack.c.b16 %v2431, %v2430
    %v2445 = vpack.c.b16 %v2433, %v2432
    %v2446 = vpack.c.b16 %v2435, %v2434
    %v2447 = vpack.c.b16 %v2437, %v2436
    %v2448 = vpack.c.b16 %v2439, %v2438
    %v2449 = vpack.c.b16 %v2441, %v2440
    %2458 = vmatpush.bf16.msra.mxu0 %v2449
    %2459 = vmatpush.bf16.msra.mxu0 %v2448
    %2460 = vmatpush.bf16.msra.mxu0 %v2447
    %2461 = vmatpush.bf16.msra.mxu0 %v2446
    %2462 = vmatpush.bf16.msra.mxu0 %v2445
    %2463 = vmatpush.bf16.msra.mxu0 %v2444
    %2464 = vmatpush.bf16.msra.mxu0 %v2443
    %2465 = vmatpush.bf16.msra.mxu0 %v2442
    %2466 = vmatmul.bf16.gmra.mxu0 %v2305
    %v2467 = vpop.f32.mrf.mxu0
    %v2468 = vadd.f32 %v2401, %v2467
    %v2469 = vpop.f32.mrf.mxu0
    %v2470 = vadd.f32 %v2403, %v2469
    %2471 = vmatmul.bf16.gmra.mxu0 %v2306
    %v2472 = vpop.f32.mrf.mxu0
    %v2473 = vadd.f32 %v2406, %v2472
    %v2474 = vpop.f32.mrf.mxu0
    %v2475 = vadd.f32 %v2408, %v2474
    %2476 = vdwg.mxu0
    %v2477 = vadd.f32 %v2468, %v2470
    %v2478 = vadd.f32 %v2477, %v2473
    %v2479 = vadd.f32 %v2478, %v2475
    %v2480 = vrot.slane %v2479, 4
    %v2481 = vadd.f32 %v2479, %v2480
    %v2482 = vrot.slane %v2481, 2
    %v2483 = vadd.f32 %v2481, %v2482
    %v2484 = vrot.slane %v2483, 1
    %v2485 = vadd.f32 %v2483, %v2484
    %v2486 = vmul.f32 %v2485, 0.03125
    %v2487 = vsub.f32 %v2468, %v2486
    %v2488 = vsub.f32 %v2470, %v2486
    %v2489 = vsub.f32 %v2473, %v2486
    %v2490 = vsub.f32 %v2475, %v2486
    %v2491 = vmul.f32 %v2487, %v2487
    %v2492 = vmul.f32 %v2488, %v2488
    %v2493 = vmul.f32 %v2489, %v2489
    %v2494 = vmul.f32 %v2490, %v2490
    %v2495 = vadd.f32 %v2491, %v2492
    %v2496 = vadd.f32 %v2495, %v2493
    %v2497 = vadd.f32 %v2496, %v2494
    %v2498 = vrot.slane %v2497, 4
    %v2499 = vadd.f32 %v2497, %v2498
    %v2500 = vrot.slane %v2499, 2
    %v2501 = vadd.f32 %v2499, %v2500
    %v2502 = vrot.slane %v2501, 1
    %v2503 = vadd.f32 %v2501, %v2502
    %v2504 = vmul.f32 %v2503, 0.03125
    %v2505 = vadd.f32 %v2504, 1e-05
    %v2506 = vrsqrt.pop %v2505
    %v2507 = vmul.f32 %v2506, %v2505
    %v2508 = vmul.f32 %v2507, %v2506
    %v2509 = vmul.f32 0.5, %v2508
    %v2510 = vsub.f32 1.5, %v2509
    %v2511 = vmul.f32 %v2506, %v2510
    %vm2512 = vweird.f32 %v2505
    %vm2513 = vweird.f32 %v2506
    %vm2514 = vmor %vm2512, %vm2513
    %v2515 = vsel %vm2514, %v2506, %v2511
    %v2516 = vmul.f32 %v2487, %v2515
    %v2517 = vmul.f32 %v2488, %v2515
    %v2518 = vmul.f32 %v2489, %v2515
    %v2519 = vmul.f32 %v2490, %v2515
    %s2520 = scalar_lea.vmem %s6, 1
    %v2521 = vld [vmem:[%s2520] sm:$0x1]
    %v2523 = vperm.slane %v2521, 0
    %v2525 = vmul.f32 %v2516, %v2523
    %v2526 = vmul.f32 %v2517, %v2523
    %v2527 = vmul.f32 %v2518, %v2523
    %v2528 = vmul.f32 %v2519, %v2523
    %s2529 = scalar_lea.vmem %s7, 1
    %v2530 = vld [vmem:[%s2529] sm:$0x1]
    %v2532 = vperm.slane %v2530, 0
    %v2534 = vadd.f32 %v2525, %v2532
    %v2535 = vadd.f32 %v2526, %v2532
    %v2536 = vadd.f32 %v2527, %v2532
    %v2537 = vadd.f32 %v2528, %v2532
    %v2538 = vmax.f32 %v2534, 0.0
    %v2539 = vmax.f32 %v2535, 0.0
    %v2540 = vmax.f32 %v2536, 0.0
    %v2541 = vmax.f32 %v2537, 0.0
    %v2542 = vadd.f32 %v2538, %v1355
    %v2543 = vadd.f32 %v2539, %v1356
    %v2544 = vadd.f32 %v2540, %v1357
    %v2545 = vadd.f32 %v2541, %v1358
    %v2546 = vmax.f32 %v2542, 0.0
    %v2547 = vmax.f32 %v2543, 0.0
    %v2548 = vmax.f32 %v2544, 0.0
    %v2549 = vmax.f32 %v2545, 0.0
    %v2550 = vadd.f32 %v2546, %v2547
    %v2551 = vrot.slane %v2550, 4
    %v2552 = vadd.f32 %v2550, %v2551
    %v2553 = vrot.slane %v2552, 2
    %v2554 = vadd.f32 %v2552, %v2553
    %v2555 = vrot.slane %v2554, 1
    %v2556 = vadd.f32 %v2554, %v2555
    %v2557 = vadd.f32 %v2548, %v2549
    %v2558 = vrot.slane %v2557, 4
    %v2559 = vadd.f32 %v2557, %v2558
    %v2560 = vrot.slane %v2559, 2
    %v2561 = vadd.f32 %v2559, %v2560
    %v2562 = vrot.slane %v2561, 1
    %v2563 = vadd.f32 %v2561, %v2562
    %v2564 = vrcp.pop 16.0
    %v2565 = vmul.f32 16.0, %v2564
    %v2566 = vsub.f32 1.0, %v2565
    %v2567 = vmul.f32 %v2564, %v2566
    %v2568 = vadd.f32 %v2564, %v2567
    %vm2569 = vweird.f32 %v2564
    %v2570 = vsel %vm2569, %v2564, %v2568
    %v2571 = vmul.f32 %v2556, %v2570
    %v2572 = vmul.f32 %v2563, %v2570
    %v2573 = vld [vmem:[%s8] sm:$0xff]
    %v2574 = vld [vmem:[%s8 + $0x8] sm:$0xff]
    %v2575 = vld [vmem:[%s8 + $0x10] sm:$0xff]
    %v2576 = vld [vmem:[%s8 + $0x18] sm:$0xff]
    %v2577 = vld [vmem:[%s8 + $0x20] sm:$0xff]
    %v2578 = vld [vmem:[%s8 + $0x28] sm:$0xff]
    %v2579 = vld [vmem:[%s8 + $0x30] sm:$0xff]
    %v2580 = vld [vmem:[%s8 + $0x38] sm:$0xff]
    %v2581 = vld [vmem:[%s8 + $0x40] sm:$0xff]
    %v2582 = vld [vmem:[%s8 + $0x48] sm:$0xff]
    %v2583 = vld [vmem:[%s8 + $0x50] sm:$0xff]
    %v2584 = vld [vmem:[%s8 + $0x58] sm:$0xff]
    %v2585 = vld [vmem:[%s8 + $0x60] sm:$0xff]
    %v2586 = vld [vmem:[%s8 + $0x68] sm:$0xff]
    %v2587 = vld [vmem:[%s8 + $0x70] sm:$0xff]
    %v2588 = vld [vmem:[%s8 + $0x78] sm:$0xff]
    %v2589 = vld [vmem:[%s9] sm:$0x1]
    %v2591 = vperm.slane %v2589, 0
    %vm2595 = vcmask 1041409
    %v2596 = vsel %vm2595, %v2572, %v2571
    %2598 = vmatpush.msra.mxu0 %v2588
    %2599 = vmatpush.msra.mxu0 %v2587
    %2600 = vmatpush.msra.mxu0 %v2586
    %2601 = vmatpush.msra.mxu0 %v2585
    %2602 = vmatpush.msra.mxu0 %v2584
    %2603 = vmatpush.msra.mxu0 %v2583
    %2604 = vmatpush.msra.mxu0 %v2582
    %2605 = vmatpush.msra.mxu0 %v2581
    %2606 = vmatpush.msra.mxu0 %v2580
    %2607 = vmatpush.msra.mxu0 %v2579
    %2608 = vmatpush.msra.mxu0 %v2578
    %2609 = vmatpush.msra.mxu0 %v2577
    %2610 = vmatpush.msra.mxu0 %v2576
    %2611 = vmatpush.msra.mxu0 %v2575
    %2612 = vmatpush.msra.mxu0 %v2574
    %2613 = vmatpush.msra.mxu0 %v2573
    %2614 = vmatmul.f32.gmra.mxu0 %v2596
    %v2615 = vpop.f32.mrf.mxu0
    %v2616 = vadd.f32 %v2591, %v2615
    %2617 = vdwg.mxu0
    %vm2618 = vcmask 66560
    %v2619 = vsel %vm2618, %v2616, -inf
    %2620 = vmax.xlane.f32.xlu0 %v2619
    %v2621 = vpop.xlane.xlu0 %2620
    %v2622 = vsub.f32 %v2616, %v2621
    %v2623 = vmul.f32 %v2622, 1.442695
    %v2624 = vpow.pop %v2623
    %v2625 = vsel %vm2618, %v2624, 0.0
    %2626 = vadd.xlane.f32.xlu0 %v2625
    %v2627 = vpop.xlane.xlu0 %2626
    %v2628 = vlog2.pop %v2627
    %v2629 = vmul.f32 %v2628, 0.6931472
    %v2630 = vadd.f32 %v2629, %v2621
    %v2631 = vsub.f32 %v2616, %v2630
    %2632 = vst.msk [vmem:[#allocation2] sm:$0x3] %vm2618, %v2631
    // Predicated region
    $region42: #{tpu_custom_call.1} parent=1 // pred_check
      _
    $region43: #{tpu_custom_call.1} parent=1 // pred_check_branch
      %2634 = sbr.rel (0) target = $region45
    $region44: #{tpu_custom_call.1} parent=1 // pred_region
      %2636 = vsyncadd [#allocation3], 0
      %s2638 = sshll.u32 [#allocation2], 4
      %s2639 = int_to_ptr.vmem [resolvable:$true] %s2638
      %s2640 = sshll.u32 %s10, 4
      %s2641 = int_to_ptr.hbm [resolvable:$true] %s2640
      %2643 = dma.vmem_to_hbm [thread:$0]  %s2639, 32, %s2641, [#allocation3]
    $region45: #{tpu_custom_call.1} parent=1 // pred_fallthru
      _
    // Predicated region
    $region46: #{tpu_custom_call.1} parent=1 // pred_check
      _
    $region47: #{tpu_custom_call.1} parent=1 // pred_check_branch
      %2645 = sbr.rel (0) target = $region49
    $region48: #{tpu_custom_call.1} parent=1 // pred_region
      %2647 = dma.done [#allocation3], 32
    $region49: #{tpu_custom_call.1} parent=1 // pred_fallthru
      _
    %2648 = vsyncpa [#allocation3], 1

</llo_original>
